<compile_context>
chip_gen: v5e
topology: v5e:2x2
jax: 0.10.0
libtpu: 0.0.40
codegen_flags: <defaults>
</compile_context>

<pallas_src>
import math

import jax
import jax.numpy as jnp
from jax.experimental import pallas as pl
from jax.experimental.pallas import tpu as pltpu

_LRELU_SLOPE = 0.2
_BN_EPS = 1e-5
_A_TILE_BYTES = 4 * 1024 * 1024  # target bf16 A-operand tile size (double-buffered)


def _device_kind():
    try:
        return jax.devices()[0].device_kind.lower()
    except Exception:
        return ""


_KIND = _device_kind()
# 128-wide lane tiles on v4/v5 (128x128 MXU), 256 on v6e/v7x (256x256 MXU).
_LANE_TILE = 128 if ("v4" in _KIND or "v5" in _KIND) else 256
# Generation-aware scoped-VMEM limit: v7x has 64 MiB physical, v4/v5/v6 have 128 MiB.
_VMEM_LIMIT = (40 * 1024 * 1024) if ("7" in _KIND) else (64 * 1024 * 1024)


def _ru(x, m):
    return (x + m - 1) // m * m


def _pick_tm(m, k):
    """Row tile (and padded row count) for the A/out operands.

    Largest divisor of m that is a multiple of 8 and keeps the bf16 A tile
    under ~_A_TILE_BYTES (capped at 4096 rows). Falls back to one full-M block
    for small awkward m (allowed: block dim equal to the full array dim)."""
    a_row_bytes = max(k, 128) * 2  # bf16, last dim lane-padded to >=128
    cap = max(8, min(4096, _A_TILE_BYTES // a_row_bytes))
    best = 0
    for t in range(8, min(m, cap) + 1, 8):
        if m % t == 0:
            best = t
    if best:
        return best, m
    if m <= 2 * cap:
        return m, m                      # single full-M block (any extent allowed)
    mp = _ru(m, 128)
    return 128, mp


def _pick_tn(n, gm):
    """Lane tile for the output / B operand; keeps >=4 parallel grid blocks."""
    if n % 128 != 0:
        return n                         # full-dim block (e.g. N=64)
    tn = _LANE_TILE if n % _LANE_TILE == 0 else 128
    while gm * (n // tn) < 4 and tn > 128:
        tn //= 2
    return tn


# ----------------------------------------------------------------------------
# Pallas kernels (single full-K block -> no accumulator scratch needed)
# ----------------------------------------------------------------------------
def _mm_bias_lrelu_kernel(a_ref, b_ref, bias_ref, o_ref):
    """o = leaky_relu(A @ B + bias); bf16 operands, f32 MXU accumulation."""
    y = jnp.dot(a_ref[...], b_ref[...], preferred_element_type=jnp.float32)
    y = y + bias_ref[...]
    o_ref[...] = jnp.where(y >= 0.0, y, _LRELU_SLOPE * y).astype(o_ref.dtype)


def _mm_stats_kernel(a_ref, b_ref, o_ref, sum_ref, ssq_ref):
    """o = A @ B (bf16) plus f32 per-row-block column sum / sum-of-squares."""
    y = jnp.dot(a_ref[...], b_ref[...], preferred_element_type=jnp.float32)
    o_ref[...] = y.astype(o_ref.dtype)
    s = jnp.sum(y, axis=0, keepdims=True)          # (1, tn) f32
    q = jnp.sum(y * y, axis=0, keepdims=True)
    tn = s.shape[-1]
    sum_ref[...] = jnp.broadcast_to(s[:, None, :], (1, 8, tn))
    ssq_ref[...] = jnp.broadcast_to(q[:, None, :], (1, 8, tn))


# ----------------------------------------------------------------------------
# Pallas wrappers
# ----------------------------------------------------------------------------
def pallas_matmul_bias_lrelu(a, b, bias, out_dtype=jnp.bfloat16):
    """leaky_relu(a @ b + bias, 0.2); bias-only fused epilogue, single K block."""
    M, K = a.shape
    K2, N = b.shape
    assert K == K2
    tm, Mp = _pick_tm(M, K)
    gm = Mp // tm
    tn = _pick_tn(N, gm)
    a = a.astype(jnp.bfloat16)
    if Mp != M:
        a = jnp.pad(a, ((0, Mp - M), (0, 0)))
    b = b.astype(jnp.bfloat16)
    t = bias.reshape(1, N).astype(jnp.float32)

    out = pl.pallas_call(
        _mm_bias_lrelu_kernel,
        out_shape=jax.ShapeDtypeStruct((Mp, N), out_dtype),
        grid_spec=pltpu.PrefetchScalarGridSpec(
            num_scalar_prefetch=0,
            grid=(gm, N // tn),
            in_specs=[
                pl.BlockSpec((tm, K), lambda i, j: (i, 0)),
                pl.BlockSpec((K, tn), lambda i, j: (0, j)),
                pl.BlockSpec((1, tn), lambda i, j: (0, j)),
            ],
            out_specs=pl.BlockSpec((tm, tn), lambda i, j: (i, j)),
        ),
        compiler_params=pltpu.CompilerParams(
            dimension_semantics=("parallel", "parallel"),
            vmem_limit_bytes=_VMEM_LIMIT,
        ),
    )(a, b, t)
    return out[:M] if Mp != M else out


def pallas_matmul_stats(a, b, out_dtype=jnp.bfloat16):
    """y = a @ b (bf16) plus f32 per-column sum / sum-of-squares partials."""
    M, K = a.shape
    K2, N = b.shape
    assert K == K2
    tm, Mp = _pick_tm(M, K)
    gm = Mp // tm
    tn = _pick_tn(N, gm)
    a = a.astype(jnp.bfloat16)
    if Mp != M:
        a = jnp.pad(a, ((0, Mp - M), (0, 0)))   # zero rows add 0 to the sums
    b = b.astype(jnp.bfloat16)

    out, psum, pssq = pl.pallas_call(
        _mm_stats_kernel,
        out_shape=(
            jax.ShapeDtypeStruct((Mp, N), out_dtype),
            jax.ShapeDtypeStruct((gm, 8, N), jnp.float32),
            jax.ShapeDtypeStruct((gm, 8, N), jnp.float32),
        ),
        grid_spec=pltpu.PrefetchScalarGridSpec(
            num_scalar_prefetch=0,
            grid=(gm, N // tn),
            in_specs=[
                pl.BlockSpec((tm, K), lambda i, j: (i, 0)),
                pl.BlockSpec((K, tn), lambda i, j: (0, j)),
            ],
            out_specs=(
                pl.BlockSpec((tm, tn), lambda i, j: (i, j)),
                pl.BlockSpec((1, 8, tn), lambda i, j: (i, 0, j)),
                pl.BlockSpec((1, 8, tn), lambda i, j: (i, 0, j)),
            ),
        ),
        compiler_params=pltpu.CompilerParams(
            dimension_semantics=("parallel", "parallel"),
            vmem_limit_bytes=_VMEM_LIMIT,
        ),
    )(a, b)

    col_sum = psum[:, 0, :].sum(axis=0)   # tiny (gm, N) reduction in JAX
    col_ssq = pssq[:, 0, :].sum(axis=0)
    out = out[:M] if Mp != M else out
    return out, col_sum, col_ssq


# ----------------------------------------------------------------------------
# Discriminator (VGGStyleDiscriminator160) built on the Pallas kernels
# ----------------------------------------------------------------------------
# (name, cin, cout, kernel, stride, pad, has_bias, has_bn)
_CONV_CFG = [
    ("conv0_0", 3, 64, 3, 1, 1, True, False),
    ("conv0_1", 64, 64, 4, 2, 1, False, True),
    ("conv1_0", 64, 128, 3, 1, 1, False, True),
    ("conv1_1", 128, 128, 4, 2, 1, False, True),
    ("conv2_0", 128, 256, 3, 1, 1, False, True),
    ("conv2_1", 256, 256, 4, 2, 1, False, True),
    ("conv3_0", 256, 512, 3, 1, 1, False, True),
    ("conv3_1", 512, 512, 4, 2, 1, False, True),
    ("conv4_0", 512, 512, 3, 1, 1, False, True),
    ("conv4_1", 512, 512, 4, 2, 1, False, True),
]
_NUM_FEAT = 64
_FLAT = _NUM_FEAT * 8 * 5 * 5  # 12800


def init_params(key):
    """Weights pre-cast to bf16 and pre-padded (K -> multiple of 8) once here."""
    params = {}
    keys = jax.random.split(key, len(_CONV_CFG) + 4)
    for i, (name, cin, cout, k, _s, _p, has_bias, has_bn) in enumerate(_CONV_CFG):
        fan_in = k * k * cin
        w = jax.random.normal(keys[i], (fan_in, cout), jnp.float32) / math.sqrt(fan_in)
        kp = _ru(fan_in, 8)
        if kp != fan_in:
            w = jnp.pad(w, ((0, kp - fan_in), (0, 0)))
        params[name + "_w"] = w.astype(jnp.bfloat16)
        if has_bias:
            params[name + "_b"] = jnp.zeros((cout,), jnp.float32)
        if has_bn:
            params[name + "_gamma"] = jnp.ones((cout,), jnp.float32)
            params[name + "_beta"] = jnp.zeros((cout,), jnp.float32)
    k1, k2, k3, k4 = keys[len(_CONV_CFG):]
    params["linear1_w"] = (jax.random.normal(k1, (_FLAT, 100), jnp.float32)
                           / math.sqrt(_FLAT)).astype(jnp.bfloat16)
    params["linear1_b"] = jax.random.normal(k2, (100,), jnp.float32) * 0.01
    params["linear2_w"] = jax.random.normal(k3, (100, 1), jnp.float32) / math.sqrt(100)
    params["linear2_b"] = jax.random.normal(k4, (1,), jnp.float32) * 0.01
    return params


def _im2col(x, k, stride, pad, k_multiple=8):
    """x: (B,H,W,C) bf16 -> (B*Ho*Wo, ru(k*k*C,8)) bf16; patch order (dy,dx,c).

    K padding (only conv0_0: 27 -> 32) is appended inside the concat so no
    extra full-array pad copy is made."""
    if pad:
        x = jnp.pad(x, ((0, 0), (pad, pad), (pad, pad), (0, 0)))
    B, Hp, Wp, C = x.shape
    Ho = (Hp - k) // stride + 1
    Wo = (Wp - k) // stride + 1
    cols = []
    for dy in range(k):
        for dx in range(k):
            cols.append(x[:, dy:dy + stride * Ho:stride, dx:dx + stride * Wo:stride, :])
    kk = k * k * C
    kpad = (-kk) % k_multiple
    if kpad:
        cols.append(jnp.zeros((B, Ho, Wo, kpad), x.dtype))
    cols = jnp.concatenate(cols, axis=-1)  # (B, Ho, Wo, kk + kpad)
    return cols.reshape(B * Ho * Wo, kk + kpad), Ho, Wo


def _bn_lrelu(y, col_sum, col_ssq, gamma, beta, rows):
    """Training-mode BN affine + LeakyReLU in plain jnp (XLA fuses this into
    the consumer's im2col slicing, so no standalone activation round trip)."""
    m = jnp.float32(rows)
    mean = col_sum / m
    var = jnp.maximum(col_ssq / m - mean * mean, 0.0)   # biased batch variance
    scale = gamma * jax.lax.rsqrt(var + _BN_EPS)
    shift = beta - mean * scale
    z = y.astype(jnp.float32) * scale + shift
    return jnp.where(z >= 0.0, z, _LRELU_SLOPE * z).astype(jnp.bfloat16)


def discriminator(params, x_nhwc):
    """VGGStyleDiscriminator160 forward. x_nhwc: (B, 160, 160, 3) -> (B, 1)."""
    B, H, W, _ = x_nhwc.shape
    assert H == 160 and W == 160, "discriminator expects 160x160 input"
    feat = x_nhwc.astype(jnp.bfloat16)
    for (name, cin, cout, k, stride, pad, has_bias, has_bn) in _CONV_CFG:
        cols, Ho, Wo = _im2col(feat, k, stride, pad)
        w = params[name + "_w"]
        if has_bn:
            y, col_sum, col_ssq = pallas_matmul_stats(cols, w)
            y = _bn_lrelu(y, col_sum, col_ssq,
                          params[name + "_gamma"], params[name + "_beta"],
                          B * Ho * Wo)
        else:
            y = pallas_matmul_bias_lrelu(cols, w, params[name + "_b"])
        feat = y.reshape(B, Ho, Wo, cout)

    # flatten with PyTorch NCHW ordering: (B, C, H, W) -> (B, C*H*W)
    flat = jnp.transpose(feat, (0, 3, 1, 2)).reshape(B, -1)
    # linear1 / linear2 have M = B rows -> plain jnp dots (no Pallas launch).
    h = jnp.dot(flat, params["linear1_w"],
                preferred_element_type=jnp.float32) + params["linear1_b"]
    h = jnp.where(h >= 0.0, h, _LRELU_SLOPE * h)
    out = jnp.dot(h, params["linear2_w"]) + params["linear2_b"][None, :]
    return out  # (B, 1) f32


# ----------------------------------------------------------------------------
# GANLoss ('vanilla' -> BCEWithLogits) and relativistic AdversarialLoss forward
# ----------------------------------------------------------------------------
def _bce_with_logits(x, target_val):
    # numerically stable BCEWithLogitsLoss (mean reduction), f32
    t = jnp.float32(target_val)
    return jnp.mean(jnp.maximum(x, 0.0) - x * t + jnp.log1p(jnp.exp(-jnp.abs(x))))


def gan_loss(pred, target_is_real, is_disc=False, loss_weight=1.0,
             real_label_val=1.0, fake_label_val=0.0):
    """GANLoss.forward semantics for gan_type='vanilla'."""
    target = real_label_val if target_is_real else fake_label_val
    loss = _bce_with_logits(pred, target)
    return loss if is_disc else loss * loss_weight


def adversarial_loss(params, fake_nchw, real_nchw):
    # fake and real are run separately so BatchNorm training-mode statistics
    # are computed per input batch (matches the reference; correctness fix).
    d_fake = discriminator(params, jnp.transpose(fake_nchw, (0, 2, 3, 1)))
    d_real = discriminator(params, jnp.transpose(real_nchw, (0, 2, 3, 1)))

    # --- discriminator loss (is_disc=True; loss_weight ignored) ---
    l_d_real = gan_loss(d_real - jnp.mean(d_fake), True, is_disc=True) * 0.5
    l_d_fake = gan_loss(d_fake - jnp.mean(d_real), False, is_disc=True) * 0.5
    loss_d = l_d_real + l_d_fake

    # --- generator loss (is_disc=False, loss_weight=1.0) ---
    l_g_real = gan_loss(d_real - jnp.mean(d_fake), False) * 0.5
    l_g_fake = gan_loss(d_fake - jnp.mean(d_real), True) * 0.5
    loss_g = l_g_real + l_g_fake

    return loss_g, loss_d


# ----------------------------------------------------------------------------
if __name__ == "__main__":
    key = jax.random.PRNGKey(0)
    k_params, k_fake, k_real, k_chk = jax.random.split(key, 4)

    # --- lightweight numerics check of the Pallas wrappers vs plain XLA ---
    ka, kb = jax.random.split(k_chk)
    a_chk = jax.random.normal(ka, (512, 288), jnp.float32).astype(jnp.bfloat16)
    b_chk = jax.random.normal(kb, (288, 128), jnp.float32).astype(jnp.bfloat16)
    bias_chk = jnp.linspace(-1.0, 1.0, 128, dtype=jnp.float32)
    ref = jnp.dot(a_chk, b_chk, preferred_element_type=jnp.float32) + bias_chk
    ref = jnp.where(ref >= 0.0, ref, _LRELU_SLOPE * ref)
    got = pallas_matmul_bias_lrelu(a_chk, b_chk, bias_chk).astype(jnp.float32)
    assert bool(jnp.allclose(got, ref, rtol=5e-2, atol=5e-1)), "bias+lrelu mismatch"
    y_chk, cs_chk, cq_chk = pallas_matmul_stats(a_chk, b_chk)
    ref_y = jnp.dot(a_chk, b_chk, preferred_element_type=jnp.float32)
    assert bool(jnp.allclose(y_chk.astype(jnp.float32), ref_y, rtol=5e-2, atol=5e-1))
    assert bool(jnp.allclose(cs_chk, ref_y.sum(0), rtol=5e-2, atol=2.0))
    assert bool(jnp.allclose(cq_chk, (ref_y * ref_y).sum(0), rtol=5e-2, atol=2.0))

    # --- full forward: B=2 fake / B=2 real, 3x160x160 (discriminator spec) ---
    fake = jax.random.normal(k_fake, (2, 3, 160, 160), jnp.float32)
    real = jax.random.normal(k_real, (2, 3, 160, 160), jnp.float32)
    params = init_params(k_params)

    loss_fn = jax.jit(adversarial_loss)
    loss_g, loss_d = loss_fn(params, fake, real)
    jax.block_until_ready((loss_g, loss_d))

    assert bool(jnp.isfinite(loss_g)) and bool(jnp.isfinite(loss_d))
    print("KERNEL_OK")
</pallas_src>

<mosaic_0001>
module attributes {stable_mosaic.version = 11 : i64} {
  func.func @_mm_bias_lrelu_kernel(%arg0: i32, %arg1: i32, %arg2: memref<512x288xbf16, #tpu.memory_space<vmem>>, %arg3: memref<288x128xbf16, #tpu.memory_space<vmem>>, %arg4: memref<1x128xf32, #tpu.memory_space<vmem>>, %arg5: memref<512x128xbf16, #tpu.memory_space<vmem>>) attributes {dimension_semantics = [#tpu.dimension_semantics<parallel>, #tpu.dimension_semantics<parallel>], iteration_bounds = array<i64: 1, 1>, scalar_prefetch = 0 : i64, scratch_operands = 0 : i64, tpu.core_type = #tpu.core_type<tc>, window_params = [{transform_indices = @transform_0, window_bounds = array<i64: 512, 288>}, {transform_indices = @transform_1, window_bounds = array<i64: 288, 128>}, {transform_indices = @transform_2, window_bounds = array<i64: 1, 128>}, {transform_indices = @transform_3, window_bounds = array<i64: 512, 128>}]} {
    %c0 = arith.constant 0 : index
    %c0_0 = arith.constant 0 : index
    %0 = vector.load %arg2[%c0, %c0_0] : memref<512x288xbf16, #tpu.memory_space<vmem>>, vector<512x288xbf16>
    %c0_1 = arith.constant 0 : index
    %c0_2 = arith.constant 0 : index
    %1 = vector.load %arg3[%c0_1, %c0_2] : memref<288x128xbf16, #tpu.memory_space<vmem>>, vector<288x128xbf16>
    %cst = arith.constant dense<0.000000e+00> : vector<512x128xf32>
    %2 = tpu.matmul %0, %1, %cst {dimension_numbers = #tpu.dot_dimension_numbers<[1], [0], [0], [1], [0, 0, 1, 1], [], []>} : vector<512x288xbf16>, vector<288x128xbf16>, vector<512x128xf32> -> vector<512x128xf32>
    %c0_3 = arith.constant 0 : index
    %c0_4 = arith.constant 0 : index
    %3 = vector.load %arg4[%c0_3, %c0_4] : memref<1x128xf32, #tpu.memory_space<vmem>>, vector<1x128xf32>
    %4 = vector.broadcast %3 : vector<1x128xf32> to vector<512x128xf32>
    %5 = arith.addf %2, %4 : vector<512x128xf32>
    %cst_5 = arith.constant 0.000000e+00 : f32
    %6 = vector.broadcast %cst_5 : f32 to vector<512x128xf32>
    %7 = arith.cmpf oge, %5, %6 : vector<512x128xf32>
    %cst_6 = arith.constant 2.000000e-01 : f32
    %8 = vector.broadcast %cst_6 : f32 to vector<512x128xf32>
    %9 = arith.mulf %8, %5 : vector<512x128xf32>
    %10 = arith.select %7, %5, %9 : vector<512x128xi1>, vector<512x128xf32>
    %11 = arith.truncf %10 : vector<512x128xf32> to vector<512x128xbf16>
    %c0_7 = arith.constant 0 : index
    %c0_8 = arith.constant 0 : index
    %12 = vector.load %arg5[%c0_7, %c0_8] : memref<512x128xbf16, #tpu.memory_space<vmem>>, vector<512x128xbf16>
    tpu.vector_store %arg5[%c0_7, %c0_8], %11 {strides = array<i32>} : memref<512x128xbf16, #tpu.memory_space<vmem>>, vector<512x128xbf16>,
    return
  }
  func.func @transform_0(%arg0: i32, %arg1: i32) -> (i32, i32) {
    %c0_i32 = arith.constant 0 : i32
    %c0_i32_0 = arith.constant 0 : i32
    return %arg0, %c0_i32 : i32, i32
  }
  func.func @transform_1(%arg0: i32, %arg1: i32) -> (i32, i32) {
    %c0_i32 = arith.constant 0 : i32
    %c0_i32_0 = arith.constant 0 : i32
    return %c0_i32, %arg1 : i32, i32
  }
  func.func @transform_2(%arg0: i32, %arg1: i32) -> (i32, i32) {
    %c0_i32 = arith.constant 0 : i32
    %c0_i32_0 = arith.constant 0 : i32
    return %c0_i32, %arg1 : i32, i32
  }
  func.func @transform_3(%arg0: i32, %arg1: i32) -> (i32, i32) {
    %c0_i32 = arith.constant 0 : i32
    return %arg0, %arg1 : i32, i32
  }
}

</mosaic_0001>

<llo_original>
// kernel: tpu_custom_call.1
$region0: #{tpu_custom_call.1}
  #allocation0 [shape = 'u32[]', space=smem, size = 0x4, offset = 0x4, fixed_abs, tag = 'smem constant byte address 0x4 - core index']
  #allocation1 [shape = 'u32[72,128]{1,0:T(1,128)}', space=vmem, size = 0x9000, scoped, tag = 'internal scratch']
  %s0 = inlined_call_operand.vmem [shape: bf16[512,288], index: 0, kind: input, shape index: {}]
  %s1 = inlined_call_operand.vmem [shape: bf16[288,128], index: 1, kind: input, shape index: {}]
  %s2 = inlined_call_operand.vmem [shape: f32[1,128], index: 2, kind: input, shape index: {}]
  %s3 = inlined_call_operand.hbm [shape: bf16[512,128], index: 3, kind: output, shape index: {}]
  %s4 = sld [smem:[#allocation0]]
  $region22: #{tpu_custom_call.1} parent=0
    _
  %s6 = ssub.s32 1, %s4
  %s7 = scalar_select 0, %s6, %s4
  $region1: #{tpu_custom_call.1} parent=0
    #allocation2 [shape = 'u8[131072]{0}', space=vmem, size = 0x20000, scoped, tag = 'output window, operand 0, single buffered']
    #allocation3 [shape = 's32[1]{0}', space=sflag, size = 0x4, scoped, tag = 'scoped memory for tpu_custom_call.1']
    %8 = vsyncpa [#allocation3], 0
    // Predicated region
    $region2: #{tpu_custom_call.1} parent=1 // pred_check
      _
    $region3: #{tpu_custom_call.1} parent=1 // pred_check_branch
      %10 = sbr.rel (0) target = $region5
    $region4: #{tpu_custom_call.1} parent=1 // pred_region
      _
    $region5: #{tpu_custom_call.1} parent=1 // pred_fallthru
      _
    // Predicated region
    $region6: #{tpu_custom_call.1} parent=1 // pred_check
      _
    $region7: #{tpu_custom_call.1} parent=1 // pred_check_branch
      %12 = sbr.rel (0) target = $region9
    $region8: #{tpu_custom_call.1} parent=1 // pred_region
      _
    $region9: #{tpu_custom_call.1} parent=1 // pred_fallthru
      _
    // Predicated region
    $region10: #{tpu_custom_call.1} parent=1 // pred_check
      _
    $region11: #{tpu_custom_call.1} parent=1 // pred_check_branch
      %14 = sbr.rel (0) target = $region13
    $region12: #{tpu_custom_call.1} parent=1 // pred_region
      _
    $region13: #{tpu_custom_call.1} parent=1 // pred_fallthru
      _
    %v16 = vld [vmem:[%s0] sm:$0xff]
    %v17 = vld [vmem:[%s0 + $0x8] sm:$0xf]
    %v18 = vld [vmem:[%s0 + $0xc] sm:$0xff]
    %v19 = vld [vmem:[%s0 + $0x14] sm:$0xf]
    %v20 = vld [vmem:[%s0 + $0x18] sm:$0xff]
    %v21 = vld [vmem:[%s0 + $0x20] sm:$0xf]
    %v22 = vld [vmem:[%s0 + $0x24] sm:$0xff]
    %v23 = vld [vmem:[%s0 + $0x2c] sm:$0xf]
    %v24 = vld [vmem:[%s0 + $0x30] sm:$0xff]
    %v25 = vld [vmem:[%s0 + $0x38] sm:$0xf]
    %v26 = vld [vmem:[%s0 + $0x3c] sm:$0xff]
    %v27 = vld [vmem:[%s0 + $0x44] sm:$0xf]
    %v28 = vld [vmem:[%s0 + $0x48] sm:$0xff]
    %v29 = vld [vmem:[%s0 + $0x50] sm:$0xf]
    %v30 = vld [vmem:[%s0 + $0x54] sm:$0xff]
    %v31 = vld [vmem:[%s0 + $0x5c] sm:$0xf]
    %v32 = vld [vmem:[%s0 + $0x60] sm:$0xff]
    %v33 = vld [vmem:[%s0 + $0x68] sm:$0xf]
    %v34 = vld [vmem:[%s0 + $0x6c] sm:$0xff]
    %v35 = vld [vmem:[%s0 + $0x74] sm:$0xf]
    %v36 = vld [vmem:[%s0 + $0x78] sm:$0xff]
    %v37 = vld [vmem:[%s0 + $0x80] sm:$0xf]
    %v38 = vld [vmem:[%s0 + $0x84] sm:$0xff]
    %v39 = vld [vmem:[%s0 + $0x8c] sm:$0xf]
    %v40 = vld [vmem:[%s0 + $0x90] sm:$0xff]
    %v41 = vld [vmem:[%s0 + $0x98] sm:$0xf]
    %v42 = vld [vmem:[%s0 + $0x9c] sm:$0xff]
    %v43 = vld [vmem:[%s0 + $0xa4] sm:$0xf]
    %v44 = vld [vmem:[%s0 + $0xa8] sm:$0xff]
    %v45 = vld [vmem:[%s0 + $0xb0] sm:$0xf]
    %v46 = vld [vmem:[%s0 + $0xb4] sm:$0xff]
    %v47 = vld [vmem:[%s0 + $0xbc] sm:$0xf]
    %v48 = vld [vmem:[%s0 + $0xc0] sm:$0xff]
    %v49 = vld [vmem:[%s0 + $0xc8] sm:$0xf]
    %v50 = vld [vmem:[%s0 + $0xcc] sm:$0xff]
    %v51 = vld [vmem:[%s0 + $0xd4] sm:$0xf]
    %v52 = vld [vmem:[%s0 + $0xd8] sm:$0xff]
    %v53 = vld [vmem:[%s0 + $0xe0] sm:$0xf]
    %v54 = vld [vmem:[%s0 + $0xe4] sm:$0xff]
    %v55 = vld [vmem:[%s0 + $0xec] sm:$0xf]
    %v56 = vld [vmem:[%s0 + $0xf0] sm:$0xff]
    %v57 = vld [vmem:[%s0 + $0xf8] sm:$0xf]
    %v58 = vld [vmem:[%s0 + $0xfc] sm:$0xff]
    %v59 = vld [vmem:[%s0 + $0x104] sm:$0xf]
    %v60 = vld [vmem:[%s0 + $0x108] sm:$0xff]
    %v61 = vld [vmem:[%s0 + $0x110] sm:$0xf]
    %v62 = vld [vmem:[%s0 + $0x114] sm:$0xff]
    %v63 = vld [vmem:[%s0 + $0x11c] sm:$0xf]
    %v64 = vld [vmem:[%s0 + $0x120] sm:$0xff]
    %v65 = vld [vmem:[%s0 + $0x128] sm:$0xf]
    %v66 = vld [vmem:[%s0 + $0x12c] sm:$0xff]
    %v67 = vld [vmem:[%s0 + $0x134] sm:$0xf]
    %v68 = vld [vmem:[%s0 + $0x138] sm:$0xff]
    %v69 = vld [vmem:[%s0 + $0x140] sm:$0xf]
    %v70 = vld [vmem:[%s0 + $0x144] sm:$0xff]
    %v71 = vld [vmem:[%s0 + $0x14c] sm:$0xf]
    %v72 = vld [vmem:[%s0 + $0x150] sm:$0xff]
    %v73 = vld [vmem:[%s0 + $0x158] sm:$0xf]
    %v74 = vld [vmem:[%s0 + $0x15c] sm:$0xff]
    %v75 = vld [vmem:[%s0 + $0x164] sm:$0xf]
    %v76 = vld [vmem:[%s0 + $0x168] sm:$0xff]
    %v77 = vld [vmem:[%s0 + $0x170] sm:$0xf]
    %v78 = vld [vmem:[%s0 + $0x174] sm:$0xff]
    %v79 = vld [vmem:[%s0 + $0x17c] sm:$0xf]
    %v80 = vld [vmem:[%s0 + $0x180] sm:$0xff]
    %v81 = vld [vmem:[%s0 + $0x188] sm:$0xf]
    %v82 = vld [vmem:[%s0 + $0x18c] sm:$0xff]
    %v83 = vld [vmem:[%s0 + $0x194] sm:$0xf]
    %v84 = vld [vmem:[%s0 + $0x198] sm:$0xff]
    %v85 = vld [vmem:[%s0 + $0x1a0] sm:$0xf]
    %v86 = vld [vmem:[%s0 + $0x1a4] sm:$0xff]
    %v87 = vld [vmem:[%s0 + $0x1ac] sm:$0xf]
    %v88 = vld [vmem:[%s0 + $0x1b0] sm:$0xff]
    %v89 = vld [vmem:[%s0 + $0x1b8] sm:$0xf]
    %v90 = vld [vmem:[%s0 + $0x1bc] sm:$0xff]
    %v91 = vld [vmem:[%s0 + $0x1c4] sm:$0xf]
    %v92 = vld [vmem:[%s0 + $0x1c8] sm:$0xff]
    %v93 = vld [vmem:[%s0 + $0x1d0] sm:$0xf]
    %v94 = vld [vmem:[%s0 + $0x1d4] sm:$0xff]
    %v95 = vld [vmem:[%s0 + $0x1dc] sm:$0xf]
    %v96 = vld [vmem:[%s0 + $0x1e0] sm:$0xff]
    %v97 = vld [vmem:[%s0 + $0x1e8] sm:$0xf]
    %v98 = vld [vmem:[%s0 + $0x1ec] sm:$0xff]
    %v99 = vld [vmem:[%s0 + $0x1f4] sm:$0xf]
    %v100 = vld [vmem:[%s0 + $0x1f8] sm:$0xff]
    %v101 = vld [vmem:[%s0 + $0x200] sm:$0xf]
    %v102 = vld [vmem:[%s0 + $0x204] sm:$0xff]
    %v103 = vld [vmem:[%s0 + $0x20c] sm:$0xf]
    %v104 = vld [vmem:[%s0 + $0x210] sm:$0xff]
    %v105 = vld [vmem:[%s0 + $0x218] sm:$0xf]
    %v106 = vld [vmem:[%s0 + $0x21c] sm:$0xff]
    %v107 = vld [vmem:[%s0 + $0x224] sm:$0xf]
    %v108 = vld [vmem:[%s0 + $0x228] sm:$0xff]
    %v109 = vld [vmem:[%s0 + $0x230] sm:$0xf]
    %v110 = vld [vmem:[%s0 + $0x234] sm:$0xff]
    %v111 = vld [vmem:[%s0 + $0x23c] sm:$0xf]
    %v112 = vld [vmem:[%s0 + $0x240] sm:$0xff]
    %v113 = vld [vmem:[%s0 + $0x248] sm:$0xf]
    %v114 = vld [vmem:[%s0 + $0x24c] sm:$0xff]
    %v115 = vld [vmem:[%s0 + $0x254] sm:$0xf]
    %v116 = vld [vmem:[%s0 + $0x258] sm:$0xff]
    %v117 = vld [vmem:[%s0 + $0x260] sm:$0xf]
    %v118 = vld [vmem:[%s0 + $0x264] sm:$0xff]
    %v119 = vld [vmem:[%s0 + $0x26c] sm:$0xf]
    %v120 = vld [vmem:[%s0 + $0x270] sm:$0xff]
    %v121 = vld [vmem:[%s0 + $0x278] sm:$0xf]
    %v122 = vld [vmem:[%s0 + $0x27c] sm:$0xff]
    %v123 = vld [vmem:[%s0 + $0x284] sm:$0xf]
    %v124 = vld [vmem:[%s0 + $0x288] sm:$0xff]
    %v125 = vld [vmem:[%s0 + $0x290] sm:$0xf]
    %v126 = vld [vmem:[%s0 + $0x294] sm:$0xff]
    %v127 = vld [vmem:[%s0 + $0x29c] sm:$0xf]
    %v128 = vld [vmem:[%s0 + $0x2a0] sm:$0xff]
    %v129 = vld [vmem:[%s0 + $0x2a8] sm:$0xf]
    %v130 = vld [vmem:[%s0 + $0x2ac] sm:$0xff]
    %v131 = vld [vmem:[%s0 + $0x2b4] sm:$0xf]
    %v132 = vld [vmem:[%s0 + $0x2b8] sm:$0xff]
    %v133 = vld [vmem:[%s0 + $0x2c0] sm:$0xf]
    %v134 = vld [vmem:[%s0 + $0x2c4] sm:$0xff]
    %v135 = vld [vmem:[%s0 + $0x2cc] sm:$0xf]
    %v136 = vld [vmem:[%s0 + $0x2d0] sm:$0xff]
    %v137 = vld [vmem:[%s0 + $0x2d8] sm:$0xf]
    %v138 = vld [vmem:[%s0 + $0x2dc] sm:$0xff]
    %v139 = vld [vmem:[%s0 + $0x2e4] sm:$0xf]
    %v140 = vld [vmem:[%s0 + $0x2e8] sm:$0xff]
    %v141 = vld [vmem:[%s0 + $0x2f0] sm:$0xf]
    %v142 = vld [vmem:[%s0 + $0x2f4] sm:$0xff]
    %v143 = vld [vmem:[%s0 + $0x2fc] sm:$0xf]
    %v144 = vld [vmem:[%s1] sm:$0xf]
    %v145 = vld [vmem:[%s1 + $0x4] sm:$0xf]
    %v146 = vld [vmem:[%s1 + $0x8] sm:$0xf]
    %v147 = vld [vmem:[%s1 + $0xc] sm:$0xf]
    %v148 = vld [vmem:[%s1 + $0x10] sm:$0xf]
    %v149 = vld [vmem:[%s1 + $0x14] sm:$0xf]
    %v150 = vld [vmem:[%s1 + $0x18] sm:$0xf]
    %v151 = vld [vmem:[%s1 + $0x1c] sm:$0xf]
    %v152 = vld [vmem:[%s1 + $0x20] sm:$0xf]
    %v153 = vld [vmem:[%s1 + $0x24] sm:$0xf]
    %v154 = vld [vmem:[%s1 + $0x28] sm:$0xf]
    %v155 = vld [vmem:[%s1 + $0x2c] sm:$0xf]
    %v156 = vld [vmem:[%s1 + $0x30] sm:$0xf]
    %v157 = vld [vmem:[%s1 + $0x34] sm:$0xf]
    %v158 = vld [vmem:[%s1 + $0x38] sm:$0xf]
    %v159 = vld [vmem:[%s1 + $0x3c] sm:$0xf]
    %v160 = vld [vmem:[%s1 + $0x40] sm:$0xf]
    %v161 = vld [vmem:[%s1 + $0x44] sm:$0xf]
    %v162 = vld [vmem:[%s1 + $0x48] sm:$0xf]
    %v163 = vld [vmem:[%s1 + $0x4c] sm:$0xf]
    %v164 = vld [vmem:[%s1 + $0x50] sm:$0xf]
    %v165 = vld [vmem:[%s1 + $0x54] sm:$0xf]
    %v166 = vld [vmem:[%s1 + $0x58] sm:$0xf]
    %v167 = vld [vmem:[%s1 + $0x5c] sm:$0xf]
    %v168 = vld [vmem:[%s1 + $0x60] sm:$0xf]
    %v169 = vld [vmem:[%s1 + $0x64] sm:$0xf]
    %v170 = vld [vmem:[%s1 + $0x68] sm:$0xf]
    %v171 = vld [vmem:[%s1 + $0x6c] sm:$0xf]
    %v172 = vld [vmem:[%s1 + $0x70] sm:$0xf]
    %v173 = vld [vmem:[%s1 + $0x74] sm:$0xf]
    %v174 = vld [vmem:[%s1 + $0x78] sm:$0xf]
    %v175 = vld [vmem:[%s1 + $0x7c] sm:$0xf]
    %v176 = vld [vmem:[%s1 + $0x80] sm:$0xf]
    %v177 = vld [vmem:[%s1 + $0x84] sm:$0xf]
    %v178 = vld [vmem:[%s1 + $0x88] sm:$0xf]
    %v179 = vld [vmem:[%s1 + $0x8c] sm:$0xf]
    %v180 = vld [vmem:[%s2] sm:$0x1]
    %v182 = vperm.slane %v180, 0
    %v312 = vunpack.c.l.b16 %v16
    %v313 = vunpack.c.h.b16 %v16
    %v314 = vunpack.c.l.b16 %v17
    %v315 = vunpack.c.l.b16 %v18
    %v316 = vunpack.c.h.b16 %v18
    %v317 = vunpack.c.l.b16 %v19
    %v318 = vunpack.c.l.b16 %v20
    %v319 = vunpack.c.h.b16 %v20
    %v320 = vunpack.c.l.b16 %v21
    %v321 = vunpack.c.l.b16 %v22
    %v322 = vunpack.c.h.b16 %v22
    %v323 = vunpack.c.l.b16 %v23
    %v324 = vunpack.c.l.b16 %v24
    %v325 = vunpack.c.h.b16 %v24
    %v326 = vunpack.c.l.b16 %v25
    %v327 = vunpack.c.l.b16 %v26
    %v328 = vunpack.c.h.b16 %v26
    %v329 = vunpack.c.l.b16 %v27
    %v330 = vunpack.c.l.b16 %v28
    %v331 = vunpack.c.h.b16 %v28
    %v332 = vunpack.c.l.b16 %v29
    %v333 = vunpack.c.l.b16 %v30
    %v334 = vunpack.c.h.b16 %v30
    %v335 = vunpack.c.l.b16 %v31
    %v336 = vunpack.c.l.b16 %v32
    %v337 = vunpack.c.h.b16 %v32
    %v338 = vunpack.c.l.b16 %v33
    %v339 = vunpack.c.l.b16 %v34
    %v340 = vunpack.c.h.b16 %v34
    %v341 = vunpack.c.l.b16 %v35
    %v342 = vunpack.c.l.b16 %v36
    %v343 = vunpack.c.h.b16 %v36
    %v344 = vunpack.c.l.b16 %v37
    %v345 = vunpack.c.l.b16 %v38
    %v346 = vunpack.c.h.b16 %v38
    %v347 = vunpack.c.l.b16 %v39
    %v348 = vunpack.c.l.b16 %v40
    %v349 = vunpack.c.h.b16 %v40
    %v350 = vunpack.c.l.b16 %v41
    %v351 = vunpack.c.l.b16 %v42
    %v352 = vunpack.c.h.b16 %v42
    %v353 = vunpack.c.l.b16 %v43
    %v354 = vunpack.c.l.b16 %v44
    %v355 = vunpack.c.h.b16 %v44
    %v356 = vunpack.c.l.b16 %v45
    %v357 = vunpack.c.l.b16 %v46
    %v358 = vunpack.c.h.b16 %v46
    %v359 = vunpack.c.l.b16 %v47
    %v360 = vunpack.c.l.b16 %v48
    %v361 = vunpack.c.h.b16 %v48
    %v362 = vunpack.c.l.b16 %v49
    %v363 = vunpack.c.l.b16 %v50
    %v364 = vunpack.c.h.b16 %v50
    %v365 = vunpack.c.l.b16 %v51
    %v366 = vunpack.c.l.b16 %v52
    %v367 = vunpack.c.h.b16 %v52
    %v368 = vunpack.c.l.b16 %v53
    %v369 = vunpack.c.l.b16 %v54
    %v370 = vunpack.c.h.b16 %v54
    %v371 = vunpack.c.l.b16 %v55
    %v372 = vunpack.c.l.b16 %v56
    %v373 = vunpack.c.h.b16 %v56
    %v374 = vunpack.c.l.b16 %v57
    %v375 = vunpack.c.l.b16 %v58
    %v376 = vunpack.c.h.b16 %v58
    %v377 = vunpack.c.l.b16 %v59
    %v378 = vunpack.c.l.b16 %v60
    %v379 = vunpack.c.h.b16 %v60
    %v380 = vunpack.c.l.b16 %v61
    %v381 = vunpack.c.l.b16 %v62
    %v382 = vunpack.c.h.b16 %v62
    %v383 = vunpack.c.l.b16 %v63
    %v384 = vunpack.c.l.b16 %v64
    %v385 = vunpack.c.h.b16 %v64
    %v386 = vunpack.c.l.b16 %v65
    %v387 = vunpack.c.l.b16 %v66
    %v388 = vunpack.c.h.b16 %v66
    %v389 = vunpack.c.l.b16 %v67
    %v390 = vunpack.c.l.b16 %v68
    %v391 = vunpack.c.h.b16 %v68
    %v392 = vunpack.c.l.b16 %v69
    %v393 = vunpack.c.l.b16 %v70
    %v394 = vunpack.c.h.b16 %v70
    %v395 = vunpack.c.l.b16 %v71
    %v396 = vunpack.c.l.b16 %v72
    %v397 = vunpack.c.h.b16 %v72
    %v398 = vunpack.c.l.b16 %v73
    %v399 = vunpack.c.l.b16 %v74
    %v400 = vunpack.c.h.b16 %v74
    %v401 = vunpack.c.l.b16 %v75
    %v402 = vunpack.c.l.b16 %v76
    %v403 = vunpack.c.h.b16 %v76
    %v404 = vunpack.c.l.b16 %v77
    %v405 = vunpack.c.l.b16 %v78
    %v406 = vunpack.c.h.b16 %v78
    %v407 = vunpack.c.l.b16 %v79
    %v408 = vunpack.c.l.b16 %v80
    %v409 = vunpack.c.h.b16 %v80
    %v410 = vunpack.c.l.b16 %v81
    %v411 = vunpack.c.l.b16 %v82
    %v412 = vunpack.c.h.b16 %v82
    %v413 = vunpack.c.l.b16 %v83
    %v414 = vunpack.c.l.b16 %v84
    %v415 = vunpack.c.h.b16 %v84
    %v416 = vunpack.c.l.b16 %v85
    %v417 = vunpack.c.l.b16 %v86
    %v418 = vunpack.c.h.b16 %v86
    %v419 = vunpack.c.l.b16 %v87
    %v420 = vunpack.c.l.b16 %v88
    %v421 = vunpack.c.h.b16 %v88
    %v422 = vunpack.c.l.b16 %v89
    %v423 = vunpack.c.l.b16 %v90
    %v424 = vunpack.c.h.b16 %v90
    %v425 = vunpack.c.l.b16 %v91
    %v426 = vunpack.c.l.b16 %v92
    %v427 = vunpack.c.h.b16 %v92
    %v428 = vunpack.c.l.b16 %v93
    %v429 = vunpack.c.l.b16 %v94
    %v430 = vunpack.c.h.b16 %v94
    %v431 = vunpack.c.l.b16 %v95
    %v432 = vunpack.c.l.b16 %v96
    %v433 = vunpack.c.h.b16 %v96
    %v434 = vunpack.c.l.b16 %v97
    %v435 = vunpack.c.l.b16 %v98
    %v436 = vunpack.c.h.b16 %v98
    %v437 = vunpack.c.l.b16 %v99
    %v438 = vunpack.c.l.b16 %v100
    %v439 = vunpack.c.h.b16 %v100
    %v440 = vunpack.c.l.b16 %v101
    %v441 = vunpack.c.l.b16 %v102
    %v442 = vunpack.c.h.b16 %v102
    %v443 = vunpack.c.l.b16 %v103
    %v444 = vunpack.c.l.b16 %v104
    %v445 = vunpack.c.h.b16 %v104
    %v446 = vunpack.c.l.b16 %v105
    %v447 = vunpack.c.l.b16 %v106
    %v448 = vunpack.c.h.b16 %v106
    %v449 = vunpack.c.l.b16 %v107
    %v450 = vunpack.c.l.b16 %v108
    %v451 = vunpack.c.h.b16 %v108
    %v452 = vunpack.c.l.b16 %v109
    %v453 = vunpack.c.l.b16 %v110
    %v454 = vunpack.c.h.b16 %v110
    %v455 = vunpack.c.l.b16 %v111
    %v456 = vunpack.c.l.b16 %v112
    %v457 = vunpack.c.h.b16 %v112
    %v458 = vunpack.c.l.b16 %v113
    %v459 = vunpack.c.l.b16 %v114
    %v460 = vunpack.c.h.b16 %v114
    %v461 = vunpack.c.l.b16 %v115
    %v462 = vunpack.c.l.b16 %v116
    %v463 = vunpack.c.h.b16 %v116
    %v464 = vunpack.c.l.b16 %v117
    %v465 = vunpack.c.l.b16 %v118
    %v466 = vunpack.c.h.b16 %v118
    %v467 = vunpack.c.l.b16 %v119
    %v468 = vunpack.c.l.b16 %v120
    %v469 = vunpack.c.h.b16 %v120
    %v470 = vunpack.c.l.b16 %v121
    %v471 = vunpack.c.l.b16 %v122
    %v472 = vunpack.c.h.b16 %v122
    %v473 = vunpack.c.l.b16 %v123
    %v474 = vunpack.c.l.b16 %v124
    %v475 = vunpack.c.h.b16 %v124
    %v476 = vunpack.c.l.b16 %v125
    %v477 = vunpack.c.l.b16 %v126
    %v478 = vunpack.c.h.b16 %v126
    %v479 = vunpack.c.l.b16 %v127
    %v480 = vunpack.c.l.b16 %v128
    %v481 = vunpack.c.h.b16 %v128
    %v482 = vunpack.c.l.b16 %v129
    %v483 = vunpack.c.l.b16 %v130
    %v484 = vunpack.c.h.b16 %v130
    %v485 = vunpack.c.l.b16 %v131
    %v486 = vunpack.c.l.b16 %v132
    %v487 = vunpack.c.h.b16 %v132
    %v488 = vunpack.c.l.b16 %v133
    %v489 = vunpack.c.l.b16 %v134
    %v490 = vunpack.c.h.b16 %v134
    %v491 = vunpack.c.l.b16 %v135
    %v492 = vunpack.c.l.b16 %v136
    %v493 = vunpack.c.h.b16 %v136
    %v494 = vunpack.c.l.b16 %v137
    %v495 = vunpack.c.l.b16 %v138
    %v496 = vunpack.c.h.b16 %v138
    %v497 = vunpack.c.l.b16 %v139
    %v498 = vunpack.c.l.b16 %v140
    %v499 = vunpack.c.h.b16 %v140
    %v500 = vunpack.c.l.b16 %v141
    %v501 = vunpack.c.l.b16 %v142
    %v502 = vunpack.c.h.b16 %v142
    %v503 = vunpack.c.l.b16 %v143
    %v504 = vpack.c.b16 %v315, %v312
    %v505 = vpack.c.b16 %v316, %v313
    %v506 = vpack.c.b16 %v317, %v314
    %v507 = vpack.c.b16 %v321, %v318
    %v508 = vpack.c.b16 %v322, %v319
    %v509 = vpack.c.b16 %v323, %v320
    %v510 = vpack.c.b16 %v327, %v324
    %v511 = vpack.c.b16 %v328, %v325
    %v512 = vpack.c.b16 %v329, %v326
    %v513 = vpack.c.b16 %v333, %v330
    %v514 = vpack.c.b16 %v334, %v331
    %v515 = vpack.c.b16 %v335, %v332
    %v516 = vpack.c.b16 %v339, %v336
    %v517 = vpack.c.b16 %v340, %v337
    %v518 = vpack.c.b16 %v341, %v338
    %v519 = vpack.c.b16 %v345, %v342
    %v520 = vpack.c.b16 %v346, %v343
    %v521 = vpack.c.b16 %v347, %v344
    %v522 = vpack.c.b16 %v351, %v348
    %v523 = vpack.c.b16 %v352, %v349
    %v524 = vpack.c.b16 %v353, %v350
    %v525 = vpack.c.b16 %v357, %v354
    %v526 = vpack.c.b16 %v358, %v355
    %v527 = vpack.c.b16 %v359, %v356
    %v528 = vpack.c.b16 %v363, %v360
    %v529 = vpack.c.b16 %v364, %v361
    %v530 = vpack.c.b16 %v365, %v362
    %v531 = vpack.c.b16 %v369, %v366
    %v532 = vpack.c.b16 %v370, %v367
    %v533 = vpack.c.b16 %v371, %v368
    %v534 = vpack.c.b16 %v375, %v372
    %v535 = vpack.c.b16 %v376, %v373
    %v536 = vpack.c.b16 %v377, %v374
    %v537 = vpack.c.b16 %v381, %v378
    %v538 = vpack.c.b16 %v382, %v379
    %v539 = vpack.c.b16 %v383, %v380
    %v540 = vpack.c.b16 %v387, %v384
    %v541 = vpack.c.b16 %v388, %v385
    %v542 = vpack.c.b16 %v389, %v386
    %v543 = vpack.c.b16 %v393, %v390
    %v544 = vpack.c.b16 %v394, %v391
    %v545 = vpack.c.b16 %v395, %v392
    %v546 = vpack.c.b16 %v399, %v396
    %v547 = vpack.c.b16 %v400, %v397
    %v548 = vpack.c.b16 %v401, %v398
    %v549 = vpack.c.b16 %v405, %v402
    %v550 = vpack.c.b16 %v406, %v403
    %v551 = vpack.c.b16 %v407, %v404
    %v552 = vpack.c.b16 %v411, %v408
    %v553 = vpack.c.b16 %v412, %v409
    %v554 = vpack.c.b16 %v413, %v410
    %v555 = vpack.c.b16 %v417, %v414
    %v556 = vpack.c.b16 %v418, %v415
    %v557 = vpack.c.b16 %v419, %v416
    %v558 = vpack.c.b16 %v423, %v420
    %v559 = vpack.c.b16 %v424, %v421
    %v560 = vpack.c.b16 %v425, %v422
    %v561 = vpack.c.b16 %v429, %v426
    %v562 = vpack.c.b16 %v430, %v427
    %v563 = vpack.c.b16 %v431, %v428
    %v564 = vpack.c.b16 %v435, %v432
    %v565 = vpack.c.b16 %v436, %v433
    %v566 = vpack.c.b16 %v437, %v434
    %v567 = vpack.c.b16 %v441, %v438
    %v568 = vpack.c.b16 %v442, %v439
    %v569 = vpack.c.b16 %v443, %v440
    %v570 = vpack.c.b16 %v447, %v444
    %v571 = vpack.c.b16 %v448, %v445
    %v572 = vpack.c.b16 %v449, %v446
    %v573 = vpack.c.b16 %v453, %v450
    %v574 = vpack.c.b16 %v454, %v451
    %v575 = vpack.c.b16 %v455, %v452
    %v576 = vpack.c.b16 %v459, %v456
    %v577 = vpack.c.b16 %v460, %v457
    %v578 = vpack.c.b16 %v461, %v458
    %v579 = vpack.c.b16 %v465, %v462
    %v580 = vpack.c.b16 %v466, %v463
    %v581 = vpack.c.b16 %v467, %v464
    %v582 = vpack.c.b16 %v471, %v468
    %v583 = vpack.c.b16 %v472, %v469
    %v584 = vpack.c.b16 %v473, %v470
    %v585 = vpack.c.b16 %v477, %v474
    %v586 = vpack.c.b16 %v478, %v475
    %v587 = vpack.c.b16 %v479, %v476
    %v588 = vpack.c.b16 %v483, %v480
    %v589 = vpack.c.b16 %v484, %v481
    %v590 = vpack.c.b16 %v485, %v482
    %v591 = vpack.c.b16 %v489, %v486
    %v592 = vpack.c.b16 %v490, %v487
    %v593 = vpack.c.b16 %v491, %v488
    %v594 = vpack.c.b16 %v495, %v492
    %v595 = vpack.c.b16 %v496, %v493
    %v596 = vpack.c.b16 %v497, %v494
    %v597 = vpack.c.b16 %v501, %v498
    %v598 = vpack.c.b16 %v502, %v499
    %v599 = vpack.c.b16 %v503, %v500
    %v700 = vunpack.c.l.b16 %v144
    %v701 = vunpack.c.l.b16 %v145
    %v702 = vunpack.c.l.b16 %v146
    %v703 = vunpack.c.l.b16 %v147
    %v704 = vunpack.c.l.b16 %v148
    %v705 = vunpack.c.l.b16 %v149
    %v706 = vunpack.c.l.b16 %v150
    %v707 = vunpack.c.l.b16 %v151
    %v708 = vunpack.c.l.b16 %v152
    %v709 = vunpack.c.l.b16 %v153
    %v710 = vunpack.c.l.b16 %v154
    %v711 = vunpack.c.l.b16 %v155
    %v712 = vunpack.c.l.b16 %v156
    %v713 = vunpack.c.l.b16 %v157
    %v714 = vunpack.c.l.b16 %v158
    %v715 = vunpack.c.l.b16 %v159
    %v716 = vunpack.c.l.b16 %v160
    %v717 = vunpack.c.l.b16 %v161
    %v718 = vunpack.c.l.b16 %v162
    %v719 = vunpack.c.l.b16 %v163
    %v720 = vunpack.c.l.b16 %v164
    %v721 = vunpack.c.l.b16 %v165
    %v722 = vunpack.c.l.b16 %v166
    %v723 = vunpack.c.l.b16 %v167
    %v724 = vunpack.c.l.b16 %v168
    %v725 = vunpack.c.l.b16 %v169
    %v726 = vunpack.c.l.b16 %v170
    %v727 = vunpack.c.l.b16 %v171
    %v728 = vunpack.c.l.b16 %v172
    %v729 = vunpack.c.l.b16 %v173
    %v730 = vunpack.c.l.b16 %v174
    %v731 = vunpack.c.l.b16 %v175
    %v732 = vunpack.c.l.b16 %v176
    %v733 = vunpack.c.l.b16 %v177
    %v734 = vunpack.c.l.b16 %v178
    %v735 = vunpack.c.l.b16 %v179
    %v736 = vpack.c.b16 %v701, %v700
    %v737 = vpack.c.b16 %v703, %v702
    %v738 = vpack.c.b16 %v705, %v704
    %v739 = vpack.c.b16 %v707, %v706
    %v740 = vpack.c.b16 %v709, %v708
    %v741 = vpack.c.b16 %v711, %v710
    %v742 = vpack.c.b16 %v713, %v712
    %v743 = vpack.c.b16 %v715, %v714
    %v744 = vpack.c.b16 %v717, %v716
    %v745 = vpack.c.b16 %v719, %v718
    %v746 = vpack.c.b16 %v721, %v720
    %v747 = vpack.c.b16 %v723, %v722
    %v748 = vpack.c.b16 %v725, %v724
    %v749 = vpack.c.b16 %v727, %v726
    %v750 = vpack.c.b16 %v729, %v728
    %v751 = vpack.c.b16 %v731, %v730
    %v752 = vpack.c.b16 %v733, %v732
    %v753 = vpack.c.b16 %v735, %v734
    %vm772 = vcmask 261120
    %v774 = vsel %vm772, %v506, 0
    %v777 = vsel %vm772, %v509, 0
    %v780 = vsel %vm772, %v512, 0
    %v783 = vsel %vm772, %v515, 0
    %v786 = vsel %vm772, %v518, 0
    %v789 = vsel %vm772, %v521, 0
    %v792 = vsel %vm772, %v524, 0
    %v795 = vsel %vm772, %v527, 0
    %v798 = vsel %vm772, %v530, 0
    %v801 = vsel %vm772, %v533, 0
    %v804 = vsel %vm772, %v536, 0
    %v807 = vsel %vm772, %v539, 0
    %v810 = vsel %vm772, %v542, 0
    %v813 = vsel %vm772, %v545, 0
    %v816 = vsel %vm772, %v548, 0
    %v819 = vsel %vm772, %v551, 0
    %v822 = vsel %vm772, %v554, 0
    %v825 = vsel %vm772, %v557, 0
    %v828 = vsel %vm772, %v560, 0
    %v831 = vsel %vm772, %v563, 0
    %v834 = vsel %vm772, %v566, 0
    %v837 = vsel %vm772, %v569, 0
    %v840 = vsel %vm772, %v572, 0
    %v843 = vsel %vm772, %v575, 0
    %v846 = vsel %vm772, %v578, 0
    %v849 = vsel %vm772, %v581, 0
    %v852 = vsel %vm772, %v584, 0
    %v855 = vsel %vm772, %v587, 0
    %v858 = vsel %vm772, %v590, 0
    %v861 = vsel %vm772, %v593, 0
    %v864 = vsel %vm772, %v596, 0
    %v867 = vsel %vm772, %v599, 0
    %869 = vmatpush.bf16.msra.mxu0 %v743
    %870 = vmatpush.bf16.msra.mxu0 %v742
    %871 = vmatpush.bf16.msra.mxu0 %v741
    %872 = vmatpush.bf16.msra.mxu0 %v740
    %873 = vmatpush.bf16.msra.mxu0 %v739
    %874 = vmatpush.bf16.msra.mxu0 %v738
    %875 = vmatpush.bf16.msra.mxu0 %v737
    %876 = vmatpush.bf16.msra.mxu0 %v736
    %877 = vmatmul.bf16.gmra.mxu0 %v504
    %v878 = vpop.f32.mrf.mxu0
    %v879 = vadd.f32 %v182, %v878
    %v880 = vpop.f32.mrf.mxu0
    %v881 = vadd.f32 %v182, %v880
    %882 = vmatmul.bf16.gmra.mxu0 %v507
    %v883 = vpop.f32.mrf.mxu0
    %v884 = vadd.f32 %v182, %v883
    %v885 = vpop.f32.mrf.mxu0
    %v886 = vadd.f32 %v182, %v885
    %887 = vmatmul.bf16.gmra.mxu0 %v510
    %v888 = vpop.f32.mrf.mxu0
    %v889 = vadd.f32 %v182, %v888
    %v890 = vpop.f32.mrf.mxu0
    %v891 = vadd.f32 %v182, %v890
    %892 = vmatmul.bf16.gmra.mxu0 %v513
    %v893 = vpop.f32.mrf.mxu0
    %v894 = vadd.f32 %v182, %v893
    %v895 = vpop.f32.mrf.mxu0
    %v896 = vadd.f32 %v182, %v895
    %897 = vmatmul.bf16.gmra.mxu0 %v516
    %v898 = vpop.f32.mrf.mxu0
    %v899 = vadd.f32 %v182, %v898
    %v900 = vpop.f32.mrf.mxu0
    %v901 = vadd.f32 %v182, %v900
    %902 = vmatmul.bf16.gmra.mxu0 %v519
    %v903 = vpop.f32.mrf.mxu0
    %v904 = vadd.f32 %v182, %v903
    %v905 = vpop.f32.mrf.mxu0
    %v906 = vadd.f32 %v182, %v905
    %907 = vmatmul.bf16.gmra.mxu0 %v522
    %v908 = vpop.f32.mrf.mxu0
    %v909 = vadd.f32 %v182, %v908
    %v910 = vpop.f32.mrf.mxu0
    %v911 = vadd.f32 %v182, %v910
    %912 = vmatmul.bf16.gmra.mxu0 %v525
    %v913 = vpop.f32.mrf.mxu0
    %v914 = vadd.f32 %v182, %v913
    %v915 = vpop.f32.mrf.mxu0
    %v916 = vadd.f32 %v182, %v915
    %917 = vmatmul.bf16.gmra.mxu0 %v528
    %v918 = vpop.f32.mrf.mxu0
    %v919 = vadd.f32 %v182, %v918
    %v920 = vpop.f32.mrf.mxu0
    %v921 = vadd.f32 %v182, %v920
    %922 = vmatmul.bf16.gmra.mxu0 %v531
    %v923 = vpop.f32.mrf.mxu0
    %v924 = vadd.f32 %v182, %v923
    %v925 = vpop.f32.mrf.mxu0
    %v926 = vadd.f32 %v182, %v925
    %927 = vmatmul.bf16.gmra.mxu0 %v534
    %v928 = vpop.f32.mrf.mxu0
    %v929 = vadd.f32 %v182, %v928
    %v930 = vpop.f32.mrf.mxu0
    %v931 = vadd.f32 %v182, %v930
    %932 = vmatmul.bf16.gmra.mxu0 %v537
    %v933 = vpop.f32.mrf.mxu0
    %v934 = vadd.f32 %v182, %v933
    %v935 = vpop.f32.mrf.mxu0
    %v936 = vadd.f32 %v182, %v935
    %937 = vmatmul.bf16.gmra.mxu0 %v540
    %v938 = vpop.f32.mrf.mxu0
    %v939 = vadd.f32 %v182, %v938
    %v940 = vpop.f32.mrf.mxu0
    %v941 = vadd.f32 %v182, %v940
    %942 = vmatmul.bf16.gmra.mxu0 %v543
    %v943 = vpop.f32.mrf.mxu0
    %v944 = vadd.f32 %v182, %v943
    %v945 = vpop.f32.mrf.mxu0
    %v946 = vadd.f32 %v182, %v945
    %947 = vmatmul.bf16.gmra.mxu0 %v546
    %v948 = vpop.f32.mrf.mxu0
    %v949 = vadd.f32 %v182, %v948
    %v950 = vpop.f32.mrf.mxu0
    %v951 = vadd.f32 %v182, %v950
    %952 = vmatmul.bf16.gmra.mxu0 %v549
    %v953 = vpop.f32.mrf.mxu0
    %v954 = vadd.f32 %v182, %v953
    %v955 = vpop.f32.mrf.mxu0
    %v956 = vadd.f32 %v182, %v955
    %957 = vmatmul.bf16.gmra.mxu0 %v552
    %v958 = vpop.f32.mrf.mxu0
    %v959 = vadd.f32 %v182, %v958
    %v960 = vpop.f32.mrf.mxu0
    %v961 = vadd.f32 %v182, %v960
    %962 = vmatmul.bf16.gmra.mxu0 %v555
    %v963 = vpop.f32.mrf.mxu0
    %v964 = vadd.f32 %v182, %v963
    %v965 = vpop.f32.mrf.mxu0
    %v966 = vadd.f32 %v182, %v965
    %967 = vmatmul.bf16.gmra.mxu0 %v558
    %v968 = vpop.f32.mrf.mxu0
    %v969 = vadd.f32 %v182, %v968
    %v970 = vpop.f32.mrf.mxu0
    %v971 = vadd.f32 %v182, %v970
    %972 = vmatmul.bf16.gmra.mxu0 %v561
    %v973 = vpop.f32.mrf.mxu0
    %v974 = vadd.f32 %v182, %v973
    %v975 = vpop.f32.mrf.mxu0
    %v976 = vadd.f32 %v182, %v975
    %977 = vmatmul.bf16.gmra.mxu0 %v564
    %v978 = vpop.f32.mrf.mxu0
    %v979 = vadd.f32 %v182, %v978
    %v980 = vpop.f32.mrf.mxu0
    %v981 = vadd.f32 %v182, %v980
    %982 = vmatmul.bf16.gmra.mxu0 %v567
    %v983 = vpop.f32.mrf.mxu0
    %v984 = vadd.f32 %v182, %v983
    %v985 = vpop.f32.mrf.mxu0
    %v986 = vadd.f32 %v182, %v985
    %987 = vmatmul.bf16.gmra.mxu0 %v570
    %v988 = vpop.f32.mrf.mxu0
    %v989 = vadd.f32 %v182, %v988
    %v990 = vpop.f32.mrf.mxu0
    %v991 = vadd.f32 %v182, %v990
    %992 = vmatmul.bf16.gmra.mxu0 %v573
    %v993 = vpop.f32.mrf.mxu0
    %v994 = vadd.f32 %v182, %v993
    %v995 = vpop.f32.mrf.mxu0
    %v996 = vadd.f32 %v182, %v995
    %997 = vmatmul.bf16.gmra.mxu0 %v576
    %v998 = vpop.f32.mrf.mxu0
    %v999 = vadd.f32 %v182, %v998
    %v1000 = vpop.f32.mrf.mxu0
    %v1001 = vadd.f32 %v182, %v1000
    %1002 = vmatmul.bf16.gmra.mxu0 %v579
    %v1003 = vpop.f32.mrf.mxu0
    %v1004 = vadd.f32 %v182, %v1003
    %v1005 = vpop.f32.mrf.mxu0
    %v1006 = vadd.f32 %v182, %v1005
    %1007 = vmatmul.bf16.gmra.mxu0 %v582
    %v1008 = vpop.f32.mrf.mxu0
    %v1009 = vadd.f32 %v182, %v1008
    %v1010 = vpop.f32.mrf.mxu0
    %v1011 = vadd.f32 %v182, %v1010
    %1012 = vmatmul.bf16.gmra.mxu0 %v585
    %v1013 = vpop.f32.mrf.mxu0
    %v1014 = vadd.f32 %v182, %v1013
    %v1015 = vpop.f32.mrf.mxu0
    %v1016 = vadd.f32 %v182, %v1015
    %1017 = vmatmul.bf16.gmra.mxu0 %v588
    %v1018 = vpop.f32.mrf.mxu0
    %v1019 = vadd.f32 %v182, %v1018
    %v1020 = vpop.f32.mrf.mxu0
    %v1021 = vadd.f32 %v182, %v1020
    %1022 = vmatmul.bf16.gmra.mxu0 %v591
    %v1023 = vpop.f32.mrf.mxu0
    %v1024 = vadd.f32 %v182, %v1023
    %v1025 = vpop.f32.mrf.mxu0
    %v1026 = vadd.f32 %v182, %v1025
    %1027 = vmatmul.bf16.gmra.mxu0 %v594
    %v1028 = vpop.f32.mrf.mxu0
    %v1029 = vadd.f32 %v182, %v1028
    %v1030 = vpop.f32.mrf.mxu0
    %v1031 = vadd.f32 %v182, %v1030
    %1032 = vmatmul.bf16.gmra.mxu0 %v597
    %v1033 = vpop.f32.mrf.mxu0
    %v1034 = vadd.f32 %v182, %v1033
    %v1035 = vpop.f32.mrf.mxu0
    %v1036 = vadd.f32 %v182, %v1035
    %1037 = vdwg.mxu0
    %1038 = vmatpush.bf16.msra.mxu0 %v751
    %1039 = vmatpush.bf16.msra.mxu0 %v750
    %1040 = vmatpush.bf16.msra.mxu0 %v749
    %1041 = vmatpush.bf16.msra.mxu0 %v748
    %1042 = vmatpush.bf16.msra.mxu0 %v747
    %1043 = vmatpush.bf16.msra.mxu0 %v746
    %1044 = vmatpush.bf16.msra.mxu0 %v745
    %1045 = vmatpush.bf16.msra.mxu0 %v744
    %1046 = vmatmul.bf16.gmra.mxu0 %v505
    %v1047 = vpop.f32.mrf.mxu0
    %v1048 = vadd.f32 %v879, %v1047
    %v1049 = vpop.f32.mrf.mxu0
    %v1050 = vadd.f32 %v881, %v1049
    %1051 = vmatmul.bf16.gmra.mxu0 %v508
    %v1052 = vpop.f32.mrf.mxu0
    %v1053 = vadd.f32 %v884, %v1052
    %v1054 = vpop.f32.mrf.mxu0
    %v1055 = vadd.f32 %v886, %v1054
    %1056 = vmatmul.bf16.gmra.mxu0 %v511
    %v1057 = vpop.f32.mrf.mxu0
    %v1058 = vadd.f32 %v889, %v1057
    %v1059 = vpop.f32.mrf.mxu0
    %v1060 = vadd.f32 %v891, %v1059
    %1061 = vmatmul.bf16.gmra.mxu0 %v514
    %v1062 = vpop.f32.mrf.mxu0
    %v1063 = vadd.f32 %v894, %v1062
    %v1064 = vpop.f32.mrf.mxu0
    %v1065 = vadd.f32 %v896, %v1064
    %1066 = vmatmul.bf16.gmra.mxu0 %v517
    %v1067 = vpop.f32.mrf.mxu0
    %v1068 = vadd.f32 %v899, %v1067
    %v1069 = vpop.f32.mrf.mxu0
    %v1070 = vadd.f32 %v901, %v1069
    %1071 = vmatmul.bf16.gmra.mxu0 %v520
    %v1072 = vpop.f32.mrf.mxu0
    %v1073 = vadd.f32 %v904, %v1072
    %v1074 = vpop.f32.mrf.mxu0
    %v1075 = vadd.f32 %v906, %v1074
    %1076 = vmatmul.bf16.gmra.mxu0 %v523
    %v1077 = vpop.f32.mrf.mxu0
    %v1078 = vadd.f32 %v909, %v1077
    %v1079 = vpop.f32.mrf.mxu0
    %v1080 = vadd.f32 %v911, %v1079
    %1081 = vmatmul.bf16.gmra.mxu0 %v526
    %v1082 = vpop.f32.mrf.mxu0
    %v1083 = vadd.f32 %v914, %v1082
    %v1084 = vpop.f32.mrf.mxu0
    %v1085 = vadd.f32 %v916, %v1084
    %1086 = vmatmul.bf16.gmra.mxu0 %v529
    %v1087 = vpop.f32.mrf.mxu0
    %v1088 = vadd.f32 %v919, %v1087
    %v1089 = vpop.f32.mrf.mxu0
    %v1090 = vadd.f32 %v921, %v1089
    %1091 = vmatmul.bf16.gmra.mxu0 %v532
    %v1092 = vpop.f32.mrf.mxu0
    %v1093 = vadd.f32 %v924, %v1092
    %v1094 = vpop.f32.mrf.mxu0
    %v1095 = vadd.f32 %v926, %v1094
    %1096 = vmatmul.bf16.gmra.mxu0 %v535
    %v1097 = vpop.f32.mrf.mxu0
    %v1098 = vadd.f32 %v929, %v1097
    %v1099 = vpop.f32.mrf.mxu0
    %v1100 = vadd.f32 %v931, %v1099
    %1101 = vmatmul.bf16.gmra.mxu0 %v538
    %v1102 = vpop.f32.mrf.mxu0
    %v1103 = vadd.f32 %v934, %v1102
    %v1104 = vpop.f32.mrf.mxu0
    %v1105 = vadd.f32 %v936, %v1104
    %1106 = vmatmul.bf16.gmra.mxu0 %v541
    %v1107 = vpop.f32.mrf.mxu0
    %v1108 = vadd.f32 %v939, %v1107
    %v1109 = vpop.f32.mrf.mxu0
    %v1110 = vadd.f32 %v941, %v1109
    %1111 = vmatmul.bf16.gmra.mxu0 %v544
    %v1112 = vpop.f32.mrf.mxu0
    %v1113 = vadd.f32 %v944, %v1112
    %v1114 = vpop.f32.mrf.mxu0
    %v1115 = vadd.f32 %v946, %v1114
    %1116 = vmatmul.bf16.gmra.mxu0 %v547
    %v1117 = vpop.f32.mrf.mxu0
    %v1118 = vadd.f32 %v949, %v1117
    %v1119 = vpop.f32.mrf.mxu0
    %v1120 = vadd.f32 %v951, %v1119
    %1121 = vmatmul.bf16.gmra.mxu0 %v550
    %v1122 = vpop.f32.mrf.mxu0
    %v1123 = vadd.f32 %v954, %v1122
    %v1124 = vpop.f32.mrf.mxu0
    %v1125 = vadd.f32 %v956, %v1124
    %1126 = vmatmul.bf16.gmra.mxu0 %v553
    %v1127 = vpop.f32.mrf.mxu0
    %v1128 = vadd.f32 %v959, %v1127
    %v1129 = vpop.f32.mrf.mxu0
    %v1130 = vadd.f32 %v961, %v1129
    %1131 = vmatmul.bf16.gmra.mxu0 %v556
    %v1132 = vpop.f32.mrf.mxu0
    %v1133 = vadd.f32 %v964, %v1132
    %v1134 = vpop.f32.mrf.mxu0
    %v1135 = vadd.f32 %v966, %v1134
    %1136 = vmatmul.bf16.gmra.mxu0 %v559
    %v1137 = vpop.f32.mrf.mxu0
    %v1138 = vadd.f32 %v969, %v1137
    %v1139 = vpop.f32.mrf.mxu0
    %v1140 = vadd.f32 %v971, %v1139
    %1141 = vmatmul.bf16.gmra.mxu0 %v562
    %v1142 = vpop.f32.mrf.mxu0
    %v1143 = vadd.f32 %v974, %v1142
    %v1144 = vpop.f32.mrf.mxu0
    %v1145 = vadd.f32 %v976, %v1144
    %1146 = vmatmul.bf16.gmra.mxu0 %v565
    %v1147 = vpop.f32.mrf.mxu0
    %v1148 = vadd.f32 %v979, %v1147
    %v1149 = vpop.f32.mrf.mxu0
    %v1150 = vadd.f32 %v981, %v1149
    %1151 = vmatmul.bf16.gmra.mxu0 %v568
    %v1152 = vpop.f32.mrf.mxu0
    %v1153 = vadd.f32 %v984, %v1152
    %v1154 = vpop.f32.mrf.mxu0
    %v1155 = vadd.f32 %v986, %v1154
    %1156 = vmatmul.bf16.gmra.mxu0 %v571
    %v1157 = vpop.f32.mrf.mxu0
    %v1158 = vadd.f32 %v989, %v1157
    %v1159 = vpop.f32.mrf.mxu0
    %v1160 = vadd.f32 %v991, %v1159
    %1161 = vmatmul.bf16.gmra.mxu0 %v574
    %v1162 = vpop.f32.mrf.mxu0
    %v1163 = vadd.f32 %v994, %v1162
    %v1164 = vpop.f32.mrf.mxu0
    %v1165 = vadd.f32 %v996, %v1164
    %1166 = vmatmul.bf16.gmra.mxu0 %v577
    %v1167 = vpop.f32.mrf.mxu0
    %v1168 = vadd.f32 %v999, %v1167
    %v1169 = vpop.f32.mrf.mxu0
    %v1170 = vadd.f32 %v1001, %v1169
    %1171 = vmatmul.bf16.gmra.mxu0 %v580
    %v1172 = vpop.f32.mrf.mxu0
    %v1173 = vadd.f32 %v1004, %v1172
    %v1174 = vpop.f32.mrf.mxu0
    %v1175 = vadd.f32 %v1006, %v1174
    %1176 = vmatmul.bf16.gmra.mxu0 %v583
    %v1177 = vpop.f32.mrf.mxu0
    %v1178 = vadd.f32 %v1009, %v1177
    %v1179 = vpop.f32.mrf.mxu0
    %v1180 = vadd.f32 %v1011, %v1179
    %1181 = vmatmul.bf16.gmra.mxu0 %v586
    %v1182 = vpop.f32.mrf.mxu0
    %v1183 = vadd.f32 %v1014, %v1182
    %v1184 = vpop.f32.mrf.mxu0
    %v1185 = vadd.f32 %v1016, %v1184
    %1186 = vmatmul.bf16.gmra.mxu0 %v589
    %v1187 = vpop.f32.mrf.mxu0
    %v1188 = vadd.f32 %v1019, %v1187
    %v1189 = vpop.f32.mrf.mxu0
    %v1190 = vadd.f32 %v1021, %v1189
    %1191 = vmatmul.bf16.gmra.mxu0 %v592
    %v1192 = vpop.f32.mrf.mxu0
    %v1193 = vadd.f32 %v1024, %v1192
    %v1194 = vpop.f32.mrf.mxu0
    %v1195 = vadd.f32 %v1026, %v1194
    %1196 = vmatmul.bf16.gmra.mxu0 %v595
    %v1197 = vpop.f32.mrf.mxu0
    %v1198 = vadd.f32 %v1029, %v1197
    %v1199 = vpop.f32.mrf.mxu0
    %v1200 = vadd.f32 %v1031, %v1199
    %1201 = vmatmul.bf16.gmra.mxu0 %v598
    %v1202 = vpop.f32.mrf.mxu0
    %v1203 = vadd.f32 %v1034, %v1202
    %v1204 = vpop.f32.mrf.mxu0
    %v1205 = vadd.f32 %v1036, %v1204
    %1206 = vdwg.mxu0
    %1207 = vmatpush.bf16.msra.mxu0 0
    %1208 = vmatpush.bf16.msra.mxu0 0
    %1209 = vmatpush.bf16.msra.mxu0 0
    %1210 = vmatpush.bf16.msra.mxu0 0
    %1211 = vmatpush.bf16.msra.mxu0 0
    %1212 = vmatpush.bf16.msra.mxu0 0
    %1213 = vmatpush.bf16.msra.mxu0 %v753
    %1214 = vmatpush.bf16.msra.mxu0 %v752
    %1215 = vmatmul.bf16.gmra.mxu0 %v774
    %v1216 = vpop.f32.mrf.mxu0
    %v1217 = vadd.f32 %v1048, %v1216
    %v1218 = vpop.f32.mrf.mxu0
    %v1219 = vadd.f32 %v1050, %v1218
    %1220 = vmatmul.bf16.gmra.mxu0 %v777
    %v1221 = vpop.f32.mrf.mxu0
    %v1222 = vadd.f32 %v1053, %v1221
    %v1223 = vpop.f32.mrf.mxu0
    %v1224 = vadd.f32 %v1055, %v1223
    %1225 = vmatmul.bf16.gmra.mxu0 %v780
    %v1226 = vpop.f32.mrf.mxu0
    %v1227 = vadd.f32 %v1058, %v1226
    %v1228 = vpop.f32.mrf.mxu0
    %v1229 = vadd.f32 %v1060, %v1228
    %1230 = vmatmul.bf16.gmra.mxu0 %v783
    %v1231 = vpop.f32.mrf.mxu0
    %v1232 = vadd.f32 %v1063, %v1231
    %v1233 = vpop.f32.mrf.mxu0
    %v1234 = vadd.f32 %v1065, %v1233
    %1235 = vmatmul.bf16.gmra.mxu0 %v786
    %v1236 = vpop.f32.mrf.mxu0
    %v1237 = vadd.f32 %v1068, %v1236
    %v1238 = vpop.f32.mrf.mxu0
    %v1239 = vadd.f32 %v1070, %v1238
    %1240 = vmatmul.bf16.gmra.mxu0 %v789
    %v1241 = vpop.f32.mrf.mxu0
    %v1242 = vadd.f32 %v1073, %v1241
    %v1243 = vpop.f32.mrf.mxu0
    %v1244 = vadd.f32 %v1075, %v1243
    %1245 = vmatmul.bf16.gmra.mxu0 %v792
    %v1246 = vpop.f32.mrf.mxu0
    %v1247 = vadd.f32 %v1078, %v1246
    %v1248 = vpop.f32.mrf.mxu0
    %v1249 = vadd.f32 %v1080, %v1248
    %1250 = vmatmul.bf16.gmra.mxu0 %v795
    %v1251 = vpop.f32.mrf.mxu0
    %v1252 = vadd.f32 %v1083, %v1251
    %v1253 = vpop.f32.mrf.mxu0
    %v1254 = vadd.f32 %v1085, %v1253
    %1255 = vmatmul.bf16.gmra.mxu0 %v798
    %v1256 = vpop.f32.mrf.mxu0
    %v1257 = vadd.f32 %v1088, %v1256
    %v1258 = vpop.f32.mrf.mxu0
    %v1259 = vadd.f32 %v1090, %v1258
    %1260 = vmatmul.bf16.gmra.mxu0 %v801
    %v1261 = vpop.f32.mrf.mxu0
    %v1262 = vadd.f32 %v1093, %v1261
    %v1263 = vpop.f32.mrf.mxu0
    %v1264 = vadd.f32 %v1095, %v1263
    %1265 = vmatmul.bf16.gmra.mxu0 %v804
    %v1266 = vpop.f32.mrf.mxu0
    %v1267 = vadd.f32 %v1098, %v1266
    %v1268 = vpop.f32.mrf.mxu0
    %v1269 = vadd.f32 %v1100, %v1268
    %1270 = vmatmul.bf16.gmra.mxu0 %v807
    %v1271 = vpop.f32.mrf.mxu0
    %v1272 = vadd.f32 %v1103, %v1271
    %v1273 = vpop.f32.mrf.mxu0
    %v1274 = vadd.f32 %v1105, %v1273
    %1275 = vmatmul.bf16.gmra.mxu0 %v810
    %v1276 = vpop.f32.mrf.mxu0
    %v1277 = vadd.f32 %v1108, %v1276
    %v1278 = vpop.f32.mrf.mxu0
    %v1279 = vadd.f32 %v1110, %v1278
    %1280 = vmatmul.bf16.gmra.mxu0 %v813
    %v1281 = vpop.f32.mrf.mxu0
    %v1282 = vadd.f32 %v1113, %v1281
    %v1283 = vpop.f32.mrf.mxu0
    %v1284 = vadd.f32 %v1115, %v1283
    %1285 = vmatmul.bf16.gmra.mxu0 %v816
    %v1286 = vpop.f32.mrf.mxu0
    %v1287 = vadd.f32 %v1118, %v1286
    %v1288 = vpop.f32.mrf.mxu0
    %v1289 = vadd.f32 %v1120, %v1288
    %1290 = vmatmul.bf16.gmra.mxu0 %v819
    %v1291 = vpop.f32.mrf.mxu0
    %v1292 = vadd.f32 %v1123, %v1291
    %v1293 = vpop.f32.mrf.mxu0
    %v1294 = vadd.f32 %v1125, %v1293
    %1295 = vmatmul.bf16.gmra.mxu0 %v822
    %v1296 = vpop.f32.mrf.mxu0
    %v1297 = vadd.f32 %v1128, %v1296
    %v1298 = vpop.f32.mrf.mxu0
    %v1299 = vadd.f32 %v1130, %v1298
    %1300 = vmatmul.bf16.gmra.mxu0 %v825
    %v1301 = vpop.f32.mrf.mxu0
    %v1302 = vadd.f32 %v1133, %v1301
    %v1303 = vpop.f32.mrf.mxu0
    %v1304 = vadd.f32 %v1135, %v1303
    %1305 = vmatmul.bf16.gmra.mxu0 %v828
    %v1306 = vpop.f32.mrf.mxu0
    %v1307 = vadd.f32 %v1138, %v1306
    %v1308 = vpop.f32.mrf.mxu0
    %v1309 = vadd.f32 %v1140, %v1308
    %1310 = vmatmul.bf16.gmra.mxu0 %v831
    %v1311 = vpop.f32.mrf.mxu0
    %v1312 = vadd.f32 %v1143, %v1311
    %v1313 = vpop.f32.mrf.mxu0
    %v1314 = vadd.f32 %v1145, %v1313
    %1315 = vmatmul.bf16.gmra.mxu0 %v834
    %v1316 = vpop.f32.mrf.mxu0
    %v1317 = vadd.f32 %v1148, %v1316
    %v1318 = vpop.f32.mrf.mxu0
    %v1319 = vadd.f32 %v1150, %v1318
    %1320 = vmatmul.bf16.gmra.mxu0 %v837
    %v1321 = vpop.f32.mrf.mxu0
    %v1322 = vadd.f32 %v1153, %v1321
    %v1323 = vpop.f32.mrf.mxu0
    %v1324 = vadd.f32 %v1155, %v1323
    %1325 = vmatmul.bf16.gmra.mxu0 %v840
    %v1326 = vpop.f32.mrf.mxu0
    %v1327 = vadd.f32 %v1158, %v1326
    %v1328 = vpop.f32.mrf.mxu0
    %v1329 = vadd.f32 %v1160, %v1328
    %1330 = vmatmul.bf16.gmra.mxu0 %v843
    %v1331 = vpop.f32.mrf.mxu0
    %v1332 = vadd.f32 %v1163, %v1331
    %v1333 = vpop.f32.mrf.mxu0
    %v1334 = vadd.f32 %v1165, %v1333
    %1335 = vmatmul.bf16.gmra.mxu0 %v846
    %v1336 = vpop.f32.mrf.mxu0
    %v1337 = vadd.f32 %v1168, %v1336
    %v1338 = vpop.f32.mrf.mxu0
    %v1339 = vadd.f32 %v1170, %v1338
    %1340 = vmatmul.bf16.gmra.mxu0 %v849
    %v1341 = vpop.f32.mrf.mxu0
    %v1342 = vadd.f32 %v1173, %v1341
    %v1343 = vpop.f32.mrf.mxu0
    %v1344 = vadd.f32 %v1175, %v1343
    %1345 = vmatmul.bf16.gmra.mxu0 %v852
    %v1346 = vpop.f32.mrf.mxu0
    %v1347 = vadd.f32 %v1178, %v1346
    %v1348 = vpop.f32.mrf.mxu0
    %v1349 = vadd.f32 %v1180, %v1348
    %1350 = vmatmul.bf16.gmra.mxu0 %v855
    %v1351 = vpop.f32.mrf.mxu0
    %v1352 = vadd.f32 %v1183, %v1351
    %v1353 = vpop.f32.mrf.mxu0
    %v1354 = vadd.f32 %v1185, %v1353
    %1355 = vmatmul.bf16.gmra.mxu0 %v858
    %v1356 = vpop.f32.mrf.mxu0
    %v1357 = vadd.f32 %v1188, %v1356
    %v1358 = vpop.f32.mrf.mxu0
    %v1359 = vadd.f32 %v1190, %v1358
    %1360 = vmatmul.bf16.gmra.mxu0 %v861
    %v1361 = vpop.f32.mrf.mxu0
    %v1362 = vadd.f32 %v1193, %v1361
    %v1363 = vpop.f32.mrf.mxu0
    %v1364 = vadd.f32 %v1195, %v1363
    %1365 = vmatmul.bf16.gmra.mxu0 %v864
    %v1366 = vpop.f32.mrf.mxu0
    %v1367 = vadd.f32 %v1198, %v1366
    %v1368 = vpop.f32.mrf.mxu0
    %v1369 = vadd.f32 %v1200, %v1368
    %1370 = vmatmul.bf16.gmra.mxu0 %v867
    %v1371 = vpop.f32.mrf.mxu0
    %v1372 = vadd.f32 %v1203, %v1371
    %v1373 = vpop.f32.mrf.mxu0
    %v1374 = vadd.f32 %v1205, %v1373
    %1375 = vdwg.mxu0
    %vm1376 = vcmp.ge.f32.partialorder %v1217, 0.0
    %vm1377 = vcmp.ge.f32.partialorder %v1219, 0.0
    %vm1378 = vcmp.ge.f32.partialorder %v1222, 0.0
    %vm1379 = vcmp.ge.f32.partialorder %v1224, 0.0
    %vm1380 = vcmp.ge.f32.partialorder %v1227, 0.0
    %vm1381 = vcmp.ge.f32.partialorder %v1229, 0.0
    %vm1382 = vcmp.ge.f32.partialorder %v1232, 0.0
    %vm1383 = vcmp.ge.f32.partialorder %v1234, 0.0
    %vm1384 = vcmp.ge.f32.partialorder %v1237, 0.0
    %vm1385 = vcmp.ge.f32.partialorder %v1239, 0.0
    %vm1386 = vcmp.ge.f32.partialorder %v1242, 0.0
    %vm1387 = vcmp.ge.f32.partialorder %v1244, 0.0
    %vm1388 = vcmp.ge.f32.partialorder %v1247, 0.0
    %vm1389 = vcmp.ge.f32.partialorder %v1249, 0.0
    %vm1390 = vcmp.ge.f32.partialorder %v1252, 0.0
    %vm1391 = vcmp.ge.f32.partialorder %v1254, 0.0
    %vm1392 = vcmp.ge.f32.partialorder %v1257, 0.0
    %vm1393 = vcmp.ge.f32.partialorder %v1259, 0.0
    %vm1394 = vcmp.ge.f32.partialorder %v1262, 0.0
    %vm1395 = vcmp.ge.f32.partialorder %v1264, 0.0
    %vm1396 = vcmp.ge.f32.partialorder %v1267, 0.0
    %vm1397 = vcmp.ge.f32.partialorder %v1269, 0.0
    %vm1398 = vcmp.ge.f32.partialorder %v1272, 0.0
    %vm1399 = vcmp.ge.f32.partialorder %v1274, 0.0
    %vm1400 = vcmp.ge.f32.partialorder %v1277, 0.0
    %vm1401 = vcmp.ge.f32.partialorder %v1279, 0.0
    %vm1402 = vcmp.ge.f32.partialorder %v1282, 0.0
    %vm1403 = vcmp.ge.f32.partialorder %v1284, 0.0
    %vm1404 = vcmp.ge.f32.partialorder %v1287, 0.0
    %vm1405 = vcmp.ge.f32.partialorder %v1289, 0.0
    %vm1406 = vcmp.ge.f32.partialorder %v1292, 0.0
    %vm1407 = vcmp.ge.f32.partialorder %v1294, 0.0
    %vm1408 = vcmp.ge.f32.partialorder %v1297, 0.0
    %vm1409 = vcmp.ge.f32.partialorder %v1299, 0.0
    %vm1410 = vcmp.ge.f32.partialorder %v1302, 0.0
    %vm1411 = vcmp.ge.f32.partialorder %v1304, 0.0
    %vm1412 = vcmp.ge.f32.partialorder %v1307, 0.0
    %vm1413 = vcmp.ge.f32.partialorder %v1309, 0.0
    %vm1414 = vcmp.ge.f32.partialorder %v1312, 0.0
    %vm1415 = vcmp.ge.f32.partialorder %v1314, 0.0
    %vm1416 = vcmp.ge.f32.partialorder %v1317, 0.0
    %vm1417 = vcmp.ge.f32.partialorder %v1319, 0.0
    %vm1418 = vcmp.ge.f32.partialorder %v1322, 0.0
    %vm1419 = vcmp.ge.f32.partialorder %v1324, 0.0
    %vm1420 = vcmp.ge.f32.partialorder %v1327, 0.0
    %vm1421 = vcmp.ge.f32.partialorder %v1329, 0.0
    %vm1422 = vcmp.ge.f32.partialorder %v1332, 0.0
    %vm1423 = vcmp.ge.f32.partialorder %v1334, 0.0
    %vm1424 = vcmp.ge.f32.partialorder %v1337, 0.0
    %vm1425 = vcmp.ge.f32.partialorder %v1339, 0.0
    %vm1426 = vcmp.ge.f32.partialorder %v1342, 0.0
    %vm1427 = vcmp.ge.f32.partialorder %v1344, 0.0
    %vm1428 = vcmp.ge.f32.partialorder %v1347, 0.0
    %vm1429 = vcmp.ge.f32.partialorder %v1349, 0.0
    %vm1430 = vcmp.ge.f32.partialorder %v1352, 0.0
    %vm1431 = vcmp.ge.f32.partialorder %v1354, 0.0
    %vm1432 = vcmp.ge.f32.partialorder %v1357, 0.0
    %vm1433 = vcmp.ge.f32.partialorder %v1359, 0.0
    %vm1434 = vcmp.ge.f32.partialorder %v1362, 0.0
    %vm1435 = vcmp.ge.f32.partialorder %v1364, 0.0
    %vm1436 = vcmp.ge.f32.partialorder %v1367, 0.0
    %vm1437 = vcmp.ge.f32.partialorder %v1369, 0.0
    %vm1438 = vcmp.ge.f32.partialorder %v1372, 0.0
    %vm1439 = vcmp.ge.f32.partialorder %v1374, 0.0
    %v1440 = vmul.f32 %v1217, 0.2
    %v1441 = vmul.f32 %v1219, 0.2
    %v1442 = vmul.f32 %v1222, 0.2
    %v1443 = vmul.f32 %v1224, 0.2
    %v1444 = vmul.f32 %v1227, 0.2
    %v1445 = vmul.f32 %v1229, 0.2
    %v1446 = vmul.f32 %v1232, 0.2
    %v1447 = vmul.f32 %v1234, 0.2
    %v1448 = vmul.f32 %v1237, 0.2
    %v1449 = vmul.f32 %v1239, 0.2
    %v1450 = vmul.f32 %v1242, 0.2
    %v1451 = vmul.f32 %v1244, 0.2
    %v1452 = vmul.f32 %v1247, 0.2
    %v1453 = vmul.f32 %v1249, 0.2
    %v1454 = vmul.f32 %v1252, 0.2
    %v1455 = vmul.f32 %v1254, 0.2
    %v1456 = vmul.f32 %v1257, 0.2
    %v1457 = vmul.f32 %v1259, 0.2
    %v1458 = vmul.f32 %v1262, 0.2
    %v1459 = vmul.f32 %v1264, 0.2
    %v1460 = vmul.f32 %v1267, 0.2
    %v1461 = vmul.f32 %v1269, 0.2
    %v1462 = vmul.f32 %v1272, 0.2
    %v1463 = vmul.f32 %v1274, 0.2
    %v1464 = vmul.f32 %v1277, 0.2
    %v1465 = vmul.f32 %v1279, 0.2
    %v1466 = vmul.f32 %v1282, 0.2
    %v1467 = vmul.f32 %v1284, 0.2
    %v1468 = vmul.f32 %v1287, 0.2
    %v1469 = vmul.f32 %v1289, 0.2
    %v1470 = vmul.f32 %v1292, 0.2
    %v1471 = vmul.f32 %v1294, 0.2
    %v1472 = vmul.f32 %v1297, 0.2
    %v1473 = vmul.f32 %v1299, 0.2
    %v1474 = vmul.f32 %v1302, 0.2
    %v1475 = vmul.f32 %v1304, 0.2
    %v1476 = vmul.f32 %v1307, 0.2
    %v1477 = vmul.f32 %v1309, 0.2
    %v1478 = vmul.f32 %v1312, 0.2
    %v1479 = vmul.f32 %v1314, 0.2
    %v1480 = vmul.f32 %v1317, 0.2
    %v1481 = vmul.f32 %v1319, 0.2
    %v1482 = vmul.f32 %v1322, 0.2
    %v1483 = vmul.f32 %v1324, 0.2
    %v1484 = vmul.f32 %v1327, 0.2
    %v1485 = vmul.f32 %v1329, 0.2
    %v1486 = vmul.f32 %v1332, 0.2
    %v1487 = vmul.f32 %v1334, 0.2
    %v1488 = vmul.f32 %v1337, 0.2
    %v1489 = vmul.f32 %v1339, 0.2
    %v1490 = vmul.f32 %v1342, 0.2
    %v1491 = vmul.f32 %v1344, 0.2
    %v1492 = vmul.f32 %v1347, 0.2
    %v1493 = vmul.f32 %v1349, 0.2
    %v1494 = vmul.f32 %v1352, 0.2
    %v1495 = vmul.f32 %v1354, 0.2
    %v1496 = vmul.f32 %v1357, 0.2
    %v1497 = vmul.f32 %v1359, 0.2
    %v1498 = vmul.f32 %v1362, 0.2
    %v1499 = vmul.f32 %v1364, 0.2
    %v1500 = vmul.f32 %v1367, 0.2
    %v1501 = vmul.f32 %v1369, 0.2
    %v1502 = vmul.f32 %v1372, 0.2
    %v1503 = vmul.f32 %v1374, 0.2
    %v1504 = vsel %vm1376, %v1217, %v1440
    %v1505 = vsel %vm1377, %v1219, %v1441
    %v1506 = vsel %vm1378, %v1222, %v1442
    %v1507 = vsel %vm1379, %v1224, %v1443
    %v1508 = vsel %vm1380, %v1227, %v1444
    %v1509 = vsel %vm1381, %v1229, %v1445
    %v1510 = vsel %vm1382, %v1232, %v1446
    %v1511 = vsel %vm1383, %v1234, %v1447
    %v1512 = vsel %vm1384, %v1237, %v1448
    %v1513 = vsel %vm1385, %v1239, %v1449
    %v1514 = vsel %vm1386, %v1242, %v1450
    %v1515 = vsel %vm1387, %v1244, %v1451
    %v1516 = vsel %vm1388, %v1247, %v1452
    %v1517 = vsel %vm1389, %v1249, %v1453
    %v1518 = vsel %vm1390, %v1252, %v1454
    %v1519 = vsel %vm1391, %v1254, %v1455
    %v1520 = vsel %vm1392, %v1257, %v1456
    %v1521 = vsel %vm1393, %v1259, %v1457
    %v1522 = vsel %vm1394, %v1262, %v1458
    %v1523 = vsel %vm1395, %v1264, %v1459
    %v1524 = vsel %vm1396, %v1267, %v1460
    %v1525 = vsel %vm1397, %v1269, %v1461
    %v1526 = vsel %vm1398, %v1272, %v1462
    %v1527 = vsel %vm1399, %v1274, %v1463
    %v1528 = vsel %vm1400, %v1277, %v1464
    %v1529 = vsel %vm1401, %v1279, %v1465
    %v1530 = vsel %vm1402, %v1282, %v1466
    %v1531 = vsel %vm1403, %v1284, %v1467
    %v1532 = vsel %vm1404, %v1287, %v1468
    %v1533 = vsel %vm1405, %v1289, %v1469
    %v1534 = vsel %vm1406, %v1292, %v1470
    %v1535 = vsel %vm1407, %v1294, %v1471
    %v1536 = vsel %vm1408, %v1297, %v1472
    %v1537 = vsel %vm1409, %v1299, %v1473
    %v1538 = vsel %vm1410, %v1302, %v1474
    %v1539 = vsel %vm1411, %v1304, %v1475
    %v1540 = vsel %vm1412, %v1307, %v1476
    %v1541 = vsel %vm1413, %v1309, %v1477
    %v1542 = vsel %vm1414, %v1312, %v1478
    %v1543 = vsel %vm1415, %v1314, %v1479
    %v1544 = vsel %vm1416, %v1317, %v1480
    %v1545 = vsel %vm1417, %v1319, %v1481
    %v1546 = vsel %vm1418, %v1322, %v1482
    %v1547 = vsel %vm1419, %v1324, %v1483
    %v1548 = vsel %vm1420, %v1327, %v1484
    %v1549 = vsel %vm1421, %v1329, %v1485
    %v1550 = vsel %vm1422, %v1332, %v1486
    %v1551 = vsel %vm1423, %v1334, %v1487
    %v1552 = vsel %vm1424, %v1337, %v1488
    %v1553 = vsel %vm1425, %v1339, %v1489
    %v1554 = vsel %vm1426, %v1342, %v1490
    %v1555 = vsel %vm1427, %v1344, %v1491
    %v1556 = vsel %vm1428, %v1347, %v1492
    %v1557 = vsel %vm1429, %v1349, %v1493
    %v1558 = vsel %vm1430, %v1352, %v1494
    %v1559 = vsel %vm1431, %v1354, %v1495
    %v1560 = vsel %vm1432, %v1357, %v1496
    %v1561 = vsel %vm1433, %v1359, %v1497
    %v1562 = vsel %vm1434, %v1362, %v1498
    %v1563 = vsel %vm1435, %v1364, %v1499
    %v1564 = vsel %vm1436, %v1367, %v1500
    %v1565 = vsel %vm1437, %v1369, %v1501
    %v1566 = vsel %vm1438, %v1372, %v1502
    %v1567 = vsel %vm1439, %v1374, %v1503
    %v1568 = vpack.c.bf16 %v1504, %v1504
    %v1569 = vpack.c.bf16 %v1505, %v1505
    %v1570 = vpack.c.bf16 %v1506, %v1506
    %v1571 = vpack.c.bf16 %v1507, %v1507
    %v1572 = vpack.c.bf16 %v1508, %v1508
    %v1573 = vpack.c.bf16 %v1509, %v1509
    %v1574 = vpack.c.bf16 %v1510, %v1510
    %v1575 = vpack.c.bf16 %v1511, %v1511
    %v1576 = vpack.c.bf16 %v1512, %v1512
    %v1577 = vpack.c.bf16 %v1513, %v1513
    %v1578 = vpack.c.bf16 %v1514, %v1514
    %v1579 = vpack.c.bf16 %v1515, %v1515
    %v1580 = vpack.c.bf16 %v1516, %v1516
    %v1581 = vpack.c.bf16 %v1517, %v1517
    %v1582 = vpack.c.bf16 %v1518, %v1518
    %v1583 = vpack.c.bf16 %v1519, %v1519
    %v1584 = vpack.c.bf16 %v1520, %v1520
    %v1585 = vpack.c.bf16 %v1521, %v1521
    %v1586 = vpack.c.bf16 %v1522, %v1522
    %v1587 = vpack.c.bf16 %v1523, %v1523
    %v1588 = vpack.c.bf16 %v1524, %v1524
    %v1589 = vpack.c.bf16 %v1525, %v1525
    %v1590 = vpack.c.bf16 %v1526, %v1526
    %v1591 = vpack.c.bf16 %v1527, %v1527
    %v1592 = vpack.c.bf16 %v1528, %v1528
    %v1593 = vpack.c.bf16 %v1529, %v1529
    %v1594 = vpack.c.bf16 %v1530, %v1530
    %v1595 = vpack.c.bf16 %v1531, %v1531
    %v1596 = vpack.c.bf16 %v1532, %v1532
    %v1597 = vpack.c.bf16 %v1533, %v1533
    %v1598 = vpack.c.bf16 %v1534, %v1534
    %v1599 = vpack.c.bf16 %v1535, %v1535
    %v1600 = vpack.c.bf16 %v1536, %v1536
    %v1601 = vpack.c.bf16 %v1537, %v1537
    %v1602 = vpack.c.bf16 %v1538, %v1538
    %v1603 = vpack.c.bf16 %v1539, %v1539
    %v1604 = vpack.c.bf16 %v1540, %v1540
    %v1605 = vpack.c.bf16 %v1541, %v1541
    %v1606 = vpack.c.bf16 %v1542, %v1542
    %v1607 = vpack.c.bf16 %v1543, %v1543
    %v1608 = vpack.c.bf16 %v1544, %v1544
    %v1609 = vpack.c.bf16 %v1545, %v1545
    %v1610 = vpack.c.bf16 %v1546, %v1546
    %v1611 = vpack.c.bf16 %v1547, %v1547
    %v1612 = vpack.c.bf16 %v1548, %v1548
    %v1613 = vpack.c.bf16 %v1549, %v1549
    %v1614 = vpack.c.bf16 %v1550, %v1550
    %v1615 = vpack.c.bf16 %v1551, %v1551
    %v1616 = vpack.c.bf16 %v1552, %v1552
    %v1617 = vpack.c.bf16 %v1553, %v1553
    %v1618 = vpack.c.bf16 %v1554, %v1554
    %v1619 = vpack.c.bf16 %v1555, %v1555
    %v1620 = vpack.c.bf16 %v1556, %v1556
    %v1621 = vpack.c.bf16 %v1557, %v1557
    %v1622 = vpack.c.bf16 %v1558, %v1558
    %v1623 = vpack.c.bf16 %v1559, %v1559
    %v1624 = vpack.c.bf16 %v1560, %v1560
    %v1625 = vpack.c.bf16 %v1561, %v1561
    %v1626 = vpack.c.bf16 %v1562, %v1562
    %v1627 = vpack.c.bf16 %v1563, %v1563
    %v1628 = vpack.c.bf16 %v1564, %v1564
    %v1629 = vpack.c.bf16 %v1565, %v1565
    %v1630 = vpack.c.bf16 %v1566, %v1566
    %v1631 = vpack.c.bf16 %v1567, %v1567
    %1632 = vst [vmem:[#allocation2] sm:$0xf] %v1568
    %1633 = vst [vmem:[#allocation2 + $0x4] sm:$0xf] %v1569
    %1634 = vst [vmem:[#allocation2 + $0x8] sm:$0xf] %v1570
    %1635 = vst [vmem:[#allocation2 + $0xc] sm:$0xf] %v1571
    %1636 = vst [vmem:[#allocation2 + $0x10] sm:$0xf] %v1572
    %1637 = vst [vmem:[#allocation2 + $0x14] sm:$0xf] %v1573
    %1638 = vst [vmem:[#allocation2 + $0x18] sm:$0xf] %v1574
    %1639 = vst [vmem:[#allocation2 + $0x1c] sm:$0xf] %v1575
    %1640 = vst [vmem:[#allocation2 + $0x20] sm:$0xf] %v1576
    %1641 = vst [vmem:[#allocation2 + $0x24] sm:$0xf] %v1577
    %1642 = vst [vmem:[#allocation2 + $0x28] sm:$0xf] %v1578
    %1643 = vst [vmem:[#allocation2 + $0x2c] sm:$0xf] %v1579
    %1644 = vst [vmem:[#allocation2 + $0x30] sm:$0xf] %v1580
    %1645 = vst [vmem:[#allocation2 + $0x34] sm:$0xf] %v1581
    %1646 = vst [vmem:[#allocation2 + $0x38] sm:$0xf] %v1582
    %1647 = vst [vmem:[#allocation2 + $0x3c] sm:$0xf] %v1583
    %1648 = vst [vmem:[#allocation2 + $0x40] sm:$0xf] %v1584
    %1649 = vst [vmem:[#allocation2 + $0x44] sm:$0xf] %v1585
    %1650 = vst [vmem:[#allocation2 + $0x48] sm:$0xf] %v1586
    %1651 = vst [vmem:[#allocation2 + $0x4c] sm:$0xf] %v1587
    %1652 = vst [vmem:[#allocation2 + $0x50] sm:$0xf] %v1588
    %1653 = vst [vmem:[#allocation2 + $0x54] sm:$0xf] %v1589
    %1654 = vst [vmem:[#allocation2 + $0x58] sm:$0xf] %v1590
    %1655 = vst [vmem:[#allocation2 + $0x5c] sm:$0xf] %v1591
    %1656 = vst [vmem:[#allocation2 + $0x60] sm:$0xf] %v1592
    %1657 = vst [vmem:[#allocation2 + $0x64] sm:$0xf] %v1593
    %1658 = vst [vmem:[#allocation2 + $0x68] sm:$0xf] %v1594
    %1659 = vst [vmem:[#allocation2 + $0x6c] sm:$0xf] %v1595
    %1660 = vst [vmem:[#allocation2 + $0x70] sm:$0xf] %v1596
    %1661 = vst [vmem:[#allocation2 + $0x74] sm:$0xf] %v1597
    %1662 = vst [vmem:[#allocation2 + $0x78] sm:$0xf] %v1598
    %1663 = vst [vmem:[#allocation2 + $0x7c] sm:$0xf] %v1599
    %1664 = vst [vmem:[#allocation2 + $0x80] sm:$0xf] %v1600
    %1665 = vst [vmem:[#allocation2 + $0x84] sm:$0xf] %v1601
    %1666 = vst [vmem:[#allocation2 + $0x88] sm:$0xf] %v1602
    %1667 = vst [vmem:[#allocation2 + $0x8c] sm:$0xf] %v1603
    %1668 = vst [vmem:[#allocation2 + $0x90] sm:$0xf] %v1604
    %1669 = vst [vmem:[#allocation2 + $0x94] sm:$0xf] %v1605
    %1670 = vst [vmem:[#allocation2 + $0x98] sm:$0xf] %v1606
    %1671 = vst [vmem:[#allocation2 + $0x9c] sm:$0xf] %v1607
    %1672 = vst [vmem:[#allocation2 + $0xa0] sm:$0xf] %v1608
    %1673 = vst [vmem:[#allocation2 + $0xa4] sm:$0xf] %v1609
    %1674 = vst [vmem:[#allocation2 + $0xa8] sm:$0xf] %v1610
    %1675 = vst [vmem:[#allocation2 + $0xac] sm:$0xf] %v1611
    %1676 = vst [vmem:[#allocation2 + $0xb0] sm:$0xf] %v1612
    %1677 = vst [vmem:[#allocation2 + $0xb4] sm:$0xf] %v1613
    %1678 = vst [vmem:[#allocation2 + $0xb8] sm:$0xf] %v1614
    %1679 = vst [vmem:[#allocation2 + $0xbc] sm:$0xf] %v1615
    %1680 = vst [vmem:[#allocation2 + $0xc0] sm:$0xf] %v1616
    %1681 = vst [vmem:[#allocation2 + $0xc4] sm:$0xf] %v1617
    %1682 = vst [vmem:[#allocation2 + $0xc8] sm:$0xf] %v1618
    %1683 = vst [vmem:[#allocation2 + $0xcc] sm:$0xf] %v1619
    %1684 = vst [vmem:[#allocation2 + $0xd0] sm:$0xf] %v1620
    %1685 = vst [vmem:[#allocation2 + $0xd4] sm:$0xf] %v1621
    %1686 = vst [vmem:[#allocation2 + $0xd8] sm:$0xf] %v1622
    %1687 = vst [vmem:[#allocation2 + $0xdc] sm:$0xf] %v1623
    %1688 = vst [vmem:[#allocation2 + $0xe0] sm:$0xf] %v1624
    %1689 = vst [vmem:[#allocation2 + $0xe4] sm:$0xf] %v1625
    %1690 = vst [vmem:[#allocation2 + $0xe8] sm:$0xf] %v1626
    %1691 = vst [vmem:[#allocation2 + $0xec] sm:$0xf] %v1627
    %1692 = vst [vmem:[#allocation2 + $0xf0] sm:$0xf] %v1628
    %1693 = vst [vmem:[#allocation2 + $0xf4] sm:$0xf] %v1629
    %1694 = vst [vmem:[#allocation2 + $0xf8] sm:$0xf] %v1630
    %1695 = vst [vmem:[#allocation2 + $0xfc] sm:$0xf] %v1631
    // Predicated region
    $region14: #{tpu_custom_call.1} parent=1 // pred_check
      _
    $region15: #{tpu_custom_call.1} parent=1 // pred_check_branch
      %1697 = sbr.rel (0) target = $region17
    $region16: #{tpu_custom_call.1} parent=1 // pred_region
      %1699 = vsyncadd [#allocation3], 0
      %s1700 = sshll.u32 [#allocation2], 4
      %s1701 = int_to_ptr.vmem [resolvable:$true] %s1700
      %s1702 = sshll.u32 %s3, 4
      %s1703 = int_to_ptr.hbm [resolvable:$true] %s1702
      %1708 = dma.vmem_to_hbm [thread:$0]  %s1701, 4096, %s1703, [#allocation3], 64, 64, 4
    $region17: #{tpu_custom_call.1} parent=1 // pred_fallthru
      _
    // Predicated region
    $region18: #{tpu_custom_call.1} parent=1 // pred_check
      _
    $region19: #{tpu_custom_call.1} parent=1 // pred_check_branch
      %1710 = sbr.rel (0) target = $region21
    $region20: #{tpu_custom_call.1} parent=1 // pred_region
      %1712 = dma.done [#allocation3], 4096
    $region21: #{tpu_custom_call.1} parent=1 // pred_fallthru
      _
    %1713 = vsyncpa [#allocation3], 1

</llo_original>
